<compile_context>
chip_gen: v5e
topology: v5e:2x2
jax: 0.10.0
libtpu: 0.0.40
codegen_flags: <defaults>
</compile_context>

<pallas_src>
import numpy as np
import jax
import jax.numpy as jnp
from jax import lax
from jax.experimental import pallas as pl
from jax.experimental.pallas import tpu as pltpu

VOCAB = 10
EMB_DIM = 3
HEAD_DIM = 4
LANE = 128          # lane-dense output width


def _transformer_kernel(ids_ref, w_ref, o_ref):
    # ids_ref: (block_b * S, 1) int32 token ids
    # w_ref  : (VOCAB + 1, 3*HEAD_DIM) fused [embedding @ (wq*scale|wk|wv)]
    #          with the fused bias appended as row VOCAB
    # o_ref  : (block_b, S, LANE) float32 output (head dim padded to LANE)
    rows = ids_ref.shape[0]
    block_b, S, lane = o_ref.shape

    # ---- fused embedding-gather + QKV projection + bias: ONE MXU matmul ----
    ids = ids_ref[...]                                              # (rows, 1)
    iota = lax.broadcasted_iota(jnp.int32, (rows, VOCAB + 1), 1)
    # one-hot row select, plus a constant ones column (index VOCAB) that picks
    # up the fused bias row of w_ref.
    onehot = jnp.logical_or(iota == ids, iota == VOCAB).astype(jnp.float32)
    qkv = jnp.dot(onehot, w_ref[...],
                  preferred_element_type=jnp.float32)               # (rows, 12)
    qkv = qkv.reshape(block_b, S, 3 * HEAD_DIM)                     # sublane-split at 8: free

    q = qkv[:, :, 0:HEAD_DIM]                 # pre-scaled by 1/sqrt(HEAD_DIM)
    k = qkv[:, :, HEAD_DIM:2 * HEAD_DIM]
    v = qkv[:, :, 2 * HEAD_DIM:3 * HEAD_DIM]

    # ---- per-sequence scaled dot-product attention (scale folded into q) ----
    scores = jnp.einsum('bqd,bkd->bqk', q, k,
                        preferred_element_type=jnp.float32)         # (b, S, S)
    m = jnp.max(scores, axis=-1, keepdims=True)
    e = jnp.exp(scores - m)
    p = e / jnp.sum(e, axis=-1, keepdims=True)     # exact divide (perf review)

    out = jnp.einsum('bqk,bkd->bqd', p, v,
                     preferred_element_type=jnp.float32)            # (b, S, 4)

    # lane-dense store: pad the head dim to LANE so the store is an unmasked
    # vst and the writeback DMA is dense; wrapper slices back to HEAD_DIM.
    o_ref[...] = jnp.concatenate(
        [out, jnp.zeros((block_b, S, lane - HEAD_DIM), jnp.float32)], axis=-1)


def transformer_forward(x, fused_params, *, block_b=None):
    """x: (B, S) or (S,) int32 token ids. Returns (B, S, HEAD_DIM) or (S, HEAD_DIM)."""
    squeeze = (x.ndim == 1)
    if squeeze:
        x = x[None, :]
    B, S = x.shape

    # Pick a batch tile so each grid step feeds >=128 rows into the MXU when
    # the batch allows it.
    if block_b is None:
        block_b = max(1, min(B, max(1, 128 // S)))
        while B % block_b:
            block_b -= 1
    grid = (B // block_b,)

    # TODO(synk): in a real pipeline this reshape/cast would be fused into the
    # producer of x instead of being a standalone tiny XLA op.
    x2d = x.reshape(B * S, 1).astype(jnp.int32)

    flops = (2 * B * S * (VOCAB + 1) * (3 * HEAD_DIM)   # fused embed+QKV+bias
             + 4 * B * S * S * HEAD_DIM)                # scores + out matmuls
    cost = pl.CostEstimate(
        flops=flops,
        transcendentals=B * S * S,                       # exp
        bytes_accessed=(B * S * 4
                        + (VOCAB + 1) * (3 * HEAD_DIM) * 4
                        + B * S * LANE * 4))

    out_padded = pl.pallas_call(
        _transformer_kernel,
        out_shape=jax.ShapeDtypeStruct((B, S, LANE), jnp.float32),
        grid=grid,
        in_specs=[
            pl.BlockSpec((block_b * S, 1), lambda b: (b, 0)),
            pl.BlockSpec((VOCAB + 1, 3 * HEAD_DIM), lambda b: (0, 0)),
        ],
        out_specs=pl.BlockSpec((block_b, S, LANE), lambda b: (b, 0, 0)),
        compiler_params=pltpu.CompilerParams(
            dimension_semantics=("parallel",)),          # shard batch over TCs (v7x)
        cost_estimate=cost,
    )(x2d, fused_params["w_aug"])

    out = out_padded[:, :, :HEAD_DIM]
    if squeeze:
        out = out[0]
    return out


def init_params(key):
    """Deterministic synthetic parameters matching nn.Embedding(10,3) and
    three nn.Linear(3,4) layers. Linear weights stored pre-transposed as
    (in, out); biases as (1, out)."""
    keys = jax.random.split(key, 7)
    emb = jax.random.normal(keys[0], (VOCAB, EMB_DIM), jnp.float32)
    bound = 1.0 / np.sqrt(EMB_DIM)

    def lin(kw, kb):
        w = jax.random.uniform(kw, (EMB_DIM, HEAD_DIM), jnp.float32, -bound, bound)
        b = jax.random.uniform(kb, (1, HEAD_DIM), jnp.float32, -bound, bound)
        return w, b

    wq, bq = lin(keys[1], keys[2])
    wk, bk = lin(keys[3], keys[4])
    wv, bv = lin(keys[5], keys[6])
    return dict(emb=emb, wq=wq, bq=bq, wk=wk, bk=bk, wv=wv, bv=bv)


def fuse_params(params):
    """One-time precompute: fold the embedding table into the QKV projection,
    fold the 1/sqrt(HEAD_DIM) attention scale into the q block, and append the
    fused bias as row VOCAB (picked up by the ones column of the one-hot)."""
    scale = np.float32(1.0 / np.sqrt(HEAD_DIM))
    w_qkv = jnp.concatenate(
        [params["wq"] * scale, params["wk"], params["wv"]], axis=1)   # (3, 12)
    b_qkv = jnp.concatenate(
        [params["bq"] * scale, params["bk"], params["bv"]], axis=1)   # (1, 12)
    w_emb_qkv = params["emb"] @ w_qkv                                 # (10, 12)
    w_aug = jnp.concatenate([w_emb_qkv, b_qkv], axis=0)               # (11, 12)
    return dict(w_aug=w_aug)


def reference_forward(x, params):
    """Pure-JAX reference of the PyTorch forward (per sequence)."""
    emb = jnp.take(params["emb"], x, axis=0)
    q = emb @ params["wq"] + params["bq"]
    k = emb @ params["wk"] + params["bk"]
    v = emb @ params["wv"] + params["bv"]
    scores = jnp.einsum('...qd,...kd->...qk', q, k) / np.sqrt(HEAD_DIM)
    p = jax.nn.softmax(scores, axis=-1)
    return jnp.einsum('...qk,...kd->...qd', p, v)


if __name__ == "__main__":
    key = jax.random.PRNGKey(0)
    params = init_params(key)
    fused = fuse_params(params)     # precomputed once, outside the hot path

    # Batched example: 32 sequences of 8 token ids in [0, 10).
    # block_b defaults to 16 -> 128 rows per grid step, grid=(2,) so v7x can
    # run one tile per TensorCore.
    B, S = 32, 8
    x = jax.random.randint(jax.random.PRNGKey(1), (B, S), 0, VOCAB, dtype=jnp.int32)

    out = transformer_forward(x, fused)
    out = jax.block_until_ready(out)
    ref = reference_forward(x, params)
    np.testing.assert_allclose(np.asarray(out), np.asarray(ref),
                               rtol=1e-5, atol=1e-5)

    # Single-sequence path (exact semantics of the original PyTorch module).
    x1 = x[0]
    out1 = jax.block_until_ready(transformer_forward(x1, fused))
    np.testing.assert_allclose(np.asarray(out1), np.asarray(reference_forward(x1, params)),
                               rtol=1e-5, atol=1e-5)

    print("KERNEL_OK")
</pallas_src>

<mosaic_0001>
module attributes {stable_mosaic.version = 11 : i64} {
  func.func @_transformer_kernel(%arg0: i32, %arg1: memref<128x1xi32, #tpu.memory_space<vmem>>, %arg2: memref<11x12xf32, #tpu.memory_space<vmem>>, %arg3: memref<16x8x128xf32, #tpu.memory_space<vmem>>) attributes {dimension_semantics = [#tpu.dimension_semantics<parallel>], iteration_bounds = array<i64: 2>, scalar_prefetch = 0 : i64, scratch_operands = 0 : i64, tpu.core_type = #tpu.core_type<tc>, window_params = [{transform_indices = @transform_0, window_bounds = array<i64: 128, 1>}, {pipeline_mode = #tpu.pipeline_mode<synchronous>, transform_indices = @transform_1, window_bounds = array<i64: 11, 12>}, {transform_indices = @transform_2, window_bounds = array<i64: 16, 8, 128>}]} {
    %c0 = arith.constant 0 : index
    %c0_0 = arith.constant 0 : index
    %0 = vector.load %arg1[%c0, %c0_0] : memref<128x1xi32, #tpu.memory_space<vmem>>, vector<128x1xi32>
    %1 = tpu.iota {dimensions = array<i32: 1>} : vector<128x11xi32>
    %2 = vector.broadcast %0 : vector<128x1xi32> to vector<128x11xi32>
    %3 = arith.cmpi eq, %1, %2 : vector<128x11xi32>
    %c10_i32 = arith.constant 10 : i32
    %4 = vector.broadcast %c10_i32 : i32 to vector<128x11xi32>
    %5 = arith.cmpi eq, %1, %4 : vector<128x11xi32>
    %6 = arith.ori %3, %5 : vector<128x11xi1>
    %7 = arith.extui %6 : vector<128x11xi1> to vector<128x11xi32>
    %8 = arith.sitofp %7 : vector<128x11xi32> to vector<128x11xf32>
    %c0_1 = arith.constant 0 : index
    %c0_2 = arith.constant 0 : index
    %9 = vector.load %arg2[%c0_1, %c0_2] : memref<11x12xf32, #tpu.memory_space<vmem>>, vector<11x12xf32>
    %cst = arith.constant dense<0.000000e+00> : vector<128x12xf32>
    %10 = tpu.matmul %8, %9, %cst {dimension_numbers = #tpu.dot_dimension_numbers<[1], [0], [0], [1], [0, 0, 1, 1], [], []>} : vector<128x11xf32>, vector<11x12xf32>, vector<128x12xf32> -> vector<128x12xf32>
    %11 = vector.shape_cast %10 : vector<128x12xf32> to vector<16x8x12xf32>
    %12 = vector.extract_strided_slice %11 {offsets = [0, 0, 0], sizes = [16, 8, 4], strides = [1, 1, 1]} : vector<16x8x12xf32> to vector<16x8x4xf32>
    %13 = vector.extract_strided_slice %11 {offsets = [0, 0, 4], sizes = [16, 8, 4], strides = [1, 1, 1]} : vector<16x8x12xf32> to vector<16x8x4xf32>
    %14 = vector.extract_strided_slice %11 {offsets = [0, 0, 8], sizes = [16, 8, 4], strides = [1, 1, 1]} : vector<16x8x12xf32> to vector<16x8x4xf32>
    "tpu.trace_start"() <{level = 10 : i32, message = "bqd,bkd->bqk"}> : () -> ()
    %cst_3 = arith.constant dense<0.000000e+00> : vector<16x8x8xf32>
    %15 = tpu.matmul %12, %13, %cst_3 {dimension_numbers = #tpu.dot_dimension_numbers<[2], [2], [1], [1], [0, 0, 0, 1, 1, 1], [0], [0]>} : vector<16x8x4xf32>, vector<16x8x4xf32>, vector<16x8x8xf32> -> vector<16x8x8xf32>
    "tpu.trace_stop"() : () -> ()
    %cst_4 = arith.constant dense<0xFF800000> : vector<16x8xf32>
    %16 = vector.multi_reduction <maximumf>, %15, %cst_4 [2] : vector<16x8x8xf32> to vector<16x8xf32>
    %17 = vector.shape_cast %16 : vector<16x8xf32> to vector<16x8x1xf32>
    %18 = vector.broadcast %17 : vector<16x8x1xf32> to vector<16x8x8xf32>
    %19 = arith.subf %15, %18 : vector<16x8x8xf32>
    %20 = math.exp %19 : vector<16x8x8xf32>
    %cst_5 = arith.constant dense<0.000000e+00> : vector<16x8xf32>
    %21 = vector.multi_reduction <add>, %20, %cst_5 [2] : vector<16x8x8xf32> to vector<16x8xf32>
    %22 = vector.shape_cast %21 : vector<16x8xf32> to vector<16x8x1xf32>
    %23 = vector.broadcast %22 : vector<16x8x1xf32> to vector<16x8x8xf32>
    %24 = arith.divf %20, %23 : vector<16x8x8xf32>
    "tpu.trace_start"() <{level = 10 : i32, message = "bqk,bkd->bqd"}> : () -> ()
    %cst_6 = arith.constant dense<0.000000e+00> : vector<16x8x4xf32>
    %25 = tpu.matmul %24, %14, %cst_6 {dimension_numbers = #tpu.dot_dimension_numbers<[2], [1], [1], [2], [0, 0, 0, 1, 1, 2], [0], [0]>} : vector<16x8x8xf32>, vector<16x8x4xf32>, vector<16x8x4xf32> -> vector<16x8x4xf32>
    %cst_7 = arith.constant 0.000000e+00 : f32
    "tpu.trace_stop"() : () -> ()
    %26 = vector.broadcast %cst_7 : f32 to vector<16x8x124xf32>
    %27 = tpu.concatenate %25, %26 in 2 : vector<16x8x4xf32>, vector<16x8x124xf32> -> vector<16x8x128xf32>
    %c0_8 = arith.constant 0 : index
    %c0_9 = arith.constant 0 : index
    %c0_10 = arith.constant 0 : index
    %28 = vector.load %arg3[%c0_8, %c0_9, %c0_10] : memref<16x8x128xf32, #tpu.memory_space<vmem>>, vector<16x8x128xf32>
    tpu.vector_store %arg3[%c0_8, %c0_9, %c0_10], %27 {strides = array<i32>} : memref<16x8x128xf32, #tpu.memory_space<vmem>>, vector<16x8x128xf32>,
    return
  }
  func.func @transform_0(%arg0: i32) -> (i32, i32) {
    %c0_i32 = arith.constant 0 : i32
    %c0_i32_0 = arith.constant 0 : i32
    return %arg0, %c0_i32 : i32, i32
  }
  func.func @transform_1(%arg0: i32) -> (i32, i32) {
    %c0_i32 = arith.constant 0 : i32
    %c0_i32_0 = arith.constant 0 : i32
    %c0_i32_1 = arith.constant 0 : i32
    return %c0_i32, %c0_i32_0 : i32, i32
  }
  func.func @transform_2(%arg0: i32) -> (i32, i32, i32) {
    %c0_i32 = arith.constant 0 : i32
    %c0_i32_0 = arith.constant 0 : i32
    %c0_i32_1 = arith.constant 0 : i32
    return %arg0, %c0_i32, %c0_i32_0 : i32, i32, i32
  }
}

</mosaic_0001>

<llo_original>
// kernel: tpu_custom_call.1
$region0: #{tpu_custom_call.1}
  #allocation0 [shape = 'u32[]', space=smem, size = 0x4, offset = 0x4, fixed_abs, tag = 'smem constant byte address 0x4 - core index']
  #allocation1 [shape = 'u32[72,128]{1,0:T(1,128)}', space=vmem, size = 0x9000, scoped, tag = 'internal scratch']
  %s0 = inlined_call_operand.vmem [shape: s32[256,1], index: 0, kind: input, shape index: {}]
  %s1 = inlined_call_operand.vmem [shape: f32[11,12], index: 1, kind: input, shape index: {}]
  %s2 = inlined_call_operand.hbm [shape: f32[32,8,128], index: 2, kind: output, shape index: {}]
  %s3 = sld [smem:[#allocation0]]
  $region41: #{tpu_custom_call.1} parent=0
    _
  %s5 = ssub.s32 1, %s3
  %s6 = scalar_select 0, %s5, %s3
  $region1: #{tpu_custom_call.1} parent=0
    #allocation2 [shape = 'u8[131072]{0}', space=vmem, size = 0x20000, scoped, tag = 'output window, operand 0']
    #allocation3 [shape = 's32[2]{0}', space=sflag, size = 0x8, scoped, tag = 'scoped memory for tpu_custom_call.1']
    %7 = vsyncpa [#allocation3], 0
    %s8 = scalar_lea.sflag [#allocation3], 1
    %9 = vsyncpa %s8, 0
    loop: start=0, step=1, limit=4
    $region2: #{tpu_custom_call.1} parent=1 // loop_pre_header
      _
    $region3: #{tpu_custom_call.1} parent=1 // loop_header
      %s11 = sphi 0, %s15
      %p12 = scmp.ge.s32.totalorder %s11, 4
      %s21 = sphi 0, %s23
      %s24 = sphi 0, %s21
      %s25 = sphi 0, %s24
      %s41 = sphi 0, %s25
      %s45 = sphi 0, %s45
      %s47 = sphi 0, %s45
      %s48 = sphi 0, %s47
      %s62 = sphi 0, %s48
      %s68 = sphi 0, %s70
      %s71 = sphi 0, %s68
      %s72 = sphi 0, %s71
      %s88 = sphi 0, %s72
    $region4: #{tpu_custom_call.1} parent=1 // loop_header_branch
      %14 = sbr.rel (%p12) target = $region8
    $region5: #{tpu_custom_call.1} parent=1 // loop_body
      %s16 = ssub.s32 %s11, 1
      %s17 = ssub.s32 %s11, 2
      %s18 = sadd.s32 %s11, 1
      %s19 = ssub.s32 %s11, %s18
      %p20 = scmp.eq.s32.totalorder %s19, 0
      %s22 = sadd.s32 %s21, 1
      %s23 = scalar_select %p20, %s21, %s22
      %p26 = pneg %p20
      %p27 = scmp.eq.s32.totalorder %s11, 1
      %p28 = por %p26, %p27
      %p29 = scmp.ne.s32.totalorder %s21, %s24
      %p30 = scmp.eq.s32.totalorder %s11, 0
      %p31 = por %p29, %p30
      %p32 = scmp.ne.s32.totalorder %s21, %s24
      %p33 = scmp.eq.s32.totalorder %s16, 1
      %p34 = por %p32, %p33
      %p35 = scmp.ne.s32.totalorder %s24, %s25
      %p36 = scmp.eq.s32.totalorder %s16, 0
      %p37 = por %p35, %p36
      %p38 = scmp.ne.s32.totalorder %s24, %s25
      %p39 = scmp.eq.s32.totalorder %s17, 1
      %p40 = por %p38, %p39
      %p42 = scmp.ne.s32.totalorder %s25, %s41
      %p43 = scmp.eq.s32.totalorder %s17, 0
      %p44 = por %p42, %p43
      %s46 = sadd.s32 %s45, 1
      %p49 = scmp.eq.s32.totalorder %s11, 1
      %p50 = scmp.ne.s32.totalorder %s45, %s47
      %p51 = scmp.eq.s32.totalorder %s11, 0
      %p52 = por %p50, %p51
      %p53 = scmp.ne.s32.totalorder %s45, %s47
      %p54 = scmp.eq.s32.totalorder %s16, 1
      %p55 = por %p53, %p54
      %p56 = scmp.ne.s32.totalorder %s47, %s48
      %p57 = scmp.eq.s32.totalorder %s16, 0
      %p58 = por %p56, %p57
      %p59 = scmp.ne.s32.totalorder %s47, %s48
      %p60 = scmp.eq.s32.totalorder %s17, 1
      %p61 = por %p59, %p60
      %p63 = scmp.ne.s32.totalorder %s48, %s62
      %p64 = scmp.eq.s32.totalorder %s17, 0
      %p65 = por %p63, %p64
      %s66 = ssub.s32 %s11, %s18
      %p67 = scmp.eq.s32.totalorder %s66, 0
      %s69 = sadd.s32 %s68, 1
      %s70 = scalar_select %p67, %s68, %s69
      %p73 = pneg %p67
      %p74 = scmp.eq.s32.totalorder %s11, 1
      %p75 = por %p73, %p74
      %p76 = scmp.ne.s32.totalorder %s68, %s71
      %p77 = scmp.eq.s32.totalorder %s11, 0
      %p78 = por %p76, %p77
      %p79 = scmp.ne.s32.totalorder %s68, %s71
      %p80 = scmp.eq.s32.totalorder %s16, 1
      %p81 = por %p79, %p80
      %p82 = scmp.ne.s32.totalorder %s71, %s72
      %p83 = scmp.eq.s32.totalorder %s16, 0
      %p84 = por %p82, %p83
      %p85 = scmp.ne.s32.totalorder %s71, %s72
      %p86 = scmp.eq.s32.totalorder %s17, 1
      %p87 = por %p85, %p86
      %p89 = scmp.ne.s32.totalorder %s72, %s88
      %p90 = scmp.eq.s32.totalorder %s17, 0
      %p91 = por %p89, %p90
      %p92 = scmp.le.s32.totalorder 1, %s11
      %p93 = scmp.lt.s32.totalorder %s11, 3
      %p94 = pnand %p92, %p93
      %p95 = pneg %p94
      // Predicated region
      $region9: #{tpu_custom_call.1} parent=5 // pred_check
        _
      $region10: #{tpu_custom_call.1} parent=5 // pred_check_branch
        %97 = sbr.rel (%p94) target = $region12
      $region11: #{tpu_custom_call.1} parent=5 // pred_region
        %s98 = ssub.s32 %s11, 1
        // Predicated region
        $region13: #{tpu_custom_call.1} parent=11 // pred_check
          %p99 = pneg %p58
        $region14: #{tpu_custom_call.1} parent=11 // pred_check_branch
          %101 = sbr.rel (%p99) target = $region16
        $region15: #{tpu_custom_call.1} parent=11 // pred_region
          _
        $region16: #{tpu_custom_call.1} parent=11 // pred_fallthru
          _
      $region12: #{tpu_custom_call.1} parent=5 // pred_fallthru
        _
      %p102 = scmp.lt.s32.totalorder %s11, 2
      // Predicated region
      $region17: #{tpu_custom_call.1} parent=5 // pred_check
        %p103 = pneg %p102
      $region18: #{tpu_custom_call.1} parent=5 // pred_check_branch
        %105 = sbr.rel (%p103) target = $region20
      $region19: #{tpu_custom_call.1} parent=5 // pred_region
        // Predicated region
        $region21: #{tpu_custom_call.1} parent=19 // pred_check
          %p106 = pneg %p31
        $region22: #{tpu_custom_call.1} parent=19 // pred_check_branch
          %108 = sbr.rel (%p106) target = $region24
        $region23: #{tpu_custom_call.1} parent=19 // pred_region
          %s109 = smul.u32 16, %s11
          %p110 = scmp.lt.s32.totalorder %s109, 31
          %s111 = scalar_select %p110, %s109, 31
          %s112 = smul.addr %s111, 8
          %s113 = scalar_lea.vmem %s0, %s112
          %s114 = smul.u32 16, %s11
        $region24: #{tpu_custom_call.1} parent=19 // pred_fallthru
          _
      $region20: #{tpu_custom_call.1} parent=5 // pred_fallthru
        _
      %p115 = scmp.le.s32.totalorder 1, %s11
      %p116 = scmp.lt.s32.totalorder %s11, 3
      %p117 = pnand %p115, %p116
      %p118 = pneg %p117
      // Predicated region
      $region25: #{tpu_custom_call.1} parent=5 // pred_check
        _
      $region26: #{tpu_custom_call.1} parent=5 // pred_check_branch
        %120 = sbr.rel (%p117) target = $region28
      $region27: #{tpu_custom_call.1} parent=5 // pred_region
        %s121 = ssub.s32 %s11, 1
        %s122 = smul.u32 16, %s16
        %p123 = scmp.lt.s32.totalorder %s122, 31
        %s124 = scalar_select %p123, %s122, 31
        %s125 = smul.addr %s124, 8
        %s126 = scalar_lea.vmem %s0, %s125
        %p127 = pneg %p37
        %p128 = pneg %p34
        %p129 = pneg %p58
        %p130 = pneg %p55
        %p131 = pneg %p84
        %p132 = pneg %p81
        %s133 = sand.u32 %s71, 1
        %s134 = scalar_lea.sflag [#allocation3], %s133
        %s135 = sand.u32 %s71, 1
        %s136 = smul.addr %s135, 128
        %s137 = scalar_lea.vmem [#allocation2], %s136
        %s138 = smul.u32 16, %s16
        %p139 = scmp.lt.s32.totalorder %s138, 31
        %s140 = scalar_select %p139, %s138, 31
        %s141 = smul.addr %s140, 8
        %s142 = scalar_lea.vmem %s0, %s141
        %s143 = smul.u32 16, %s16
        %s144 = smul.u32 16, %s16
        %v145 = vld [vmem:[%s142] sm:$0xff]
        %v146 = vld [vmem:[%s142 + $0x8] sm:$0xff]
        %v147 = vld [vmem:[%s142 + $0x10] sm:$0xff]
        %v148 = vld [vmem:[%s142 + $0x18] sm:$0xff]
        %v149 = vld [vmem:[%s142 + $0x20] sm:$0xff]
        %v150 = vld [vmem:[%s142 + $0x28] sm:$0xff]
        %v151 = vld [vmem:[%s142 + $0x30] sm:$0xff]
        %v152 = vld [vmem:[%s142 + $0x38] sm:$0xff]
        %v153 = vld [vmem:[%s142 + $0x40] sm:$0xff]
        %v154 = vld [vmem:[%s142 + $0x48] sm:$0xff]
        %v155 = vld [vmem:[%s142 + $0x50] sm:$0xff]
        %v156 = vld [vmem:[%s142 + $0x58] sm:$0xff]
        %v157 = vld [vmem:[%s142 + $0x60] sm:$0xff]
        %v158 = vld [vmem:[%s142 + $0x68] sm:$0xff]
        %v159 = vld [vmem:[%s142 + $0x70] sm:$0xff]
        %v160 = vld [vmem:[%s142 + $0x78] sm:$0xff]
        %v161 = vlaneseq
        %v162 = vand.u32 %v161, 127
        %163 = vset.pattern.permute.xlu0 0
        %164 = vperm.xlu0 %163, %v145
        %v165 = vpop.permute.xlu0 %164
        %166 = vset.pattern.permute.xlu0 0
        %167 = vperm.xlu0 %166, %v146
        %v168 = vpop.permute.xlu0 %167
        %169 = vset.pattern.permute.xlu0 0
        %170 = vperm.xlu0 %169, %v147
        %v171 = vpop.permute.xlu0 %170
        %172 = vset.pattern.permute.xlu0 0
        %173 = vperm.xlu0 %172, %v148
        %v174 = vpop.permute.xlu0 %173
        %175 = vset.pattern.permute.xlu0 0
        %176 = vperm.xlu0 %175, %v149
        %v177 = vpop.permute.xlu0 %176
        %178 = vset.pattern.permute.xlu0 0
        %179 = vperm.xlu0 %178, %v150
        %v180 = vpop.permute.xlu0 %179
        %181 = vset.pattern.permute.xlu0 0
        %182 = vperm.xlu0 %181, %v151
        %v183 = vpop.permute.xlu0 %182
        %184 = vset.pattern.permute.xlu0 0
        %185 = vperm.xlu0 %184, %v152
        %v186 = vpop.permute.xlu0 %185
        %187 = vset.pattern.permute.xlu0 0
        %188 = vperm.xlu0 %187, %v153
        %v189 = vpop.permute.xlu0 %188
        %190 = vset.pattern.permute.xlu0 0
        %191 = vperm.xlu0 %190, %v154
        %v192 = vpop.permute.xlu0 %191
        %193 = vset.pattern.permute.xlu0 0
        %194 = vperm.xlu0 %193, %v155
        %v195 = vpop.permute.xlu0 %194
        %196 = vset.pattern.permute.xlu0 0
        %197 = vperm.xlu0 %196, %v156
        %v198 = vpop.permute.xlu0 %197
        %199 = vset.pattern.permute.xlu0 0
        %200 = vperm.xlu0 %199, %v157
        %v201 = vpop.permute.xlu0 %200
        %202 = vset.pattern.permute.xlu0 0
        %203 = vperm.xlu0 %202, %v158
        %v204 = vpop.permute.xlu0 %203
        %205 = vset.pattern.permute.xlu0 0
        %206 = vperm.xlu0 %205, %v159
        %v207 = vpop.permute.xlu0 %206
        %208 = vset.pattern.permute.xlu0 0
        %209 = vperm.xlu0 %208, %v160
        %v210 = vpop.permute.xlu0 %209
        %vm211 = vcmp.eq.s32.totalorder %v162, %v165
        %vm212 = vcmp.eq.s32.totalorder %v162, %v168
        %vm213 = vcmp.eq.s32.totalorder %v162, %v171
        %vm214 = vcmp.eq.s32.totalorder %v162, %v174
        %vm215 = vcmp.eq.s32.totalorder %v162, %v177
        %vm216 = vcmp.eq.s32.totalorder %v162, %v180
        %vm217 = vcmp.eq.s32.totalorder %v162, %v183
        %vm218 = vcmp.eq.s32.totalorder %v162, %v186
        %vm219 = vcmp.eq.s32.totalorder %v162, %v189
        %vm220 = vcmp.eq.s32.totalorder %v162, %v192
        %vm221 = vcmp.eq.s32.totalorder %v162, %v195
        %vm222 = vcmp.eq.s32.totalorder %v162, %v198
        %vm223 = vcmp.eq.s32.totalorder %v162, %v201
        %vm224 = vcmp.eq.s32.totalorder %v162, %v204
        %vm225 = vcmp.eq.s32.totalorder %v162, %v207
        %vm226 = vcmp.eq.s32.totalorder %v162, %v210
        %vm227 = vcmp.eq.s32.totalorder %v162, 10
        %vm228 = vmor %vm211, %vm227
        %vm229 = vmor %vm212, %vm227
        %vm230 = vmor %vm213, %vm227
        %vm231 = vmor %vm214, %vm227
        %vm232 = vmor %vm215, %vm227
        %vm233 = vmor %vm216, %vm227
        %vm234 = vmor %vm217, %vm227
        %vm235 = vmor %vm218, %vm227
        %vm236 = vmor %vm219, %vm227
        %vm237 = vmor %vm220, %vm227
        %vm238 = vmor %vm221, %vm227
        %vm239 = vmor %vm222, %vm227
        %vm240 = vmor %vm223, %vm227
        %vm241 = vmor %vm224, %vm227
        %vm242 = vmor %vm225, %vm227
        %vm243 = vmor %vm226, %vm227
        %v244 = vsel %vm228, 1, 0
        %v245 = vsel %vm229, 1, 0
        %v246 = vsel %vm230, 1, 0
        %v247 = vsel %vm231, 1, 0
        %v248 = vsel %vm232, 1, 0
        %v249 = vsel %vm233, 1, 0
        %v250 = vsel %vm234, 1, 0
        %v251 = vsel %vm235, 1, 0
        %v252 = vsel %vm236, 1, 0
        %v253 = vsel %vm237, 1, 0
        %v254 = vsel %vm238, 1, 0
        %v255 = vsel %vm239, 1, 0
        %v256 = vsel %vm240, 1, 0
        %v257 = vsel %vm241, 1, 0
        %v258 = vsel %vm242, 1, 0
        %v259 = vsel %vm243, 1, 0
        %v260 = vcvt.s32.f32 %v244
        %v261 = vcvt.s32.f32 %v245
        %v262 = vcvt.s32.f32 %v246
        %v263 = vcvt.s32.f32 %v247
        %v264 = vcvt.s32.f32 %v248
        %v265 = vcvt.s32.f32 %v249
        %v266 = vcvt.s32.f32 %v250
        %v267 = vcvt.s32.f32 %v251
        %v268 = vcvt.s32.f32 %v252
        %v269 = vcvt.s32.f32 %v253
        %v270 = vcvt.s32.f32 %v254
        %v271 = vcvt.s32.f32 %v255
        %v272 = vcvt.s32.f32 %v256
        %v273 = vcvt.s32.f32 %v257
        %v274 = vcvt.s32.f32 %v258
        %v275 = vcvt.s32.f32 %v259
        %v276 = vld [vmem:[%s1] sm:$0xff]
        %v277 = vld [vmem:[%s1 + $0x8] sm:$0x7]
        %vm278 = vcmask 89088
        %v280 = vsel %vm278, %v260, 0
        %v283 = vsel %vm278, %v261, 0
        %v286 = vsel %vm278, %v262, 0
        %v289 = vsel %vm278, %v263, 0
        %v292 = vsel %vm278, %v264, 0
        %v295 = vsel %vm278, %v265, 0
        %v298 = vsel %vm278, %v266, 0
        %v301 = vsel %vm278, %v267, 0
        %v304 = vsel %vm278, %v268, 0
        %v307 = vsel %vm278, %v269, 0
        %v310 = vsel %vm278, %v270, 0
        %v313 = vsel %vm278, %v271, 0
        %v316 = vsel %vm278, %v272, 0
        %v319 = vsel %vm278, %v273, 0
        %v322 = vsel %vm278, %v274, 0
        %v325 = vsel %vm278, %v275, 0
        %vm327 = vcmask 1042432
        %v329 = vsel %vm327, %v277, 0
        %331 = vmatpush.msra.mxu0 0.0
        %332 = vmatpush.msra.mxu0 0.0
        %333 = vmatpush.msra.mxu0 0.0
        %334 = vmatpush.msra.mxu0 0.0
        %335 = vmatpush.msra.mxu0 0.0
        %336 = vmatpush.msra.mxu0 0.0
        %337 = vmatpush.msra.mxu0 0.0
        %338 = vmatpush.msra.mxu0 0.0
        %339 = vmatpush.msra.mxu0 0.0
        %340 = vmatpush.msra.mxu0 0.0
        %341 = vmatpush.msra.mxu0 0.0
        %342 = vmatpush.msra.mxu0 0.0
        %343 = vmatpush.msra.mxu0 0.0
        %344 = vmatpush.msra.mxu0 0.0
        %345 = vmatpush.msra.mxu0 %v329
        %346 = vmatpush.msra.mxu0 %v276
        %347 = vmatmul.f32.gmra.mxu0 %v280
        %v348 = vpop.f32.mrf.mxu0
        %v349 = vadd.f32 0.0, %v348
        %350 = vmatmul.f32.gmra.mxu0 %v283
        %v351 = vpop.f32.mrf.mxu0
        %v352 = vadd.f32 0.0, %v351
        %353 = vmatmul.f32.gmra.mxu0 %v286
        %v354 = vpop.f32.mrf.mxu0
        %v355 = vadd.f32 0.0, %v354
        %356 = vmatmul.f32.gmra.mxu0 %v289
        %v357 = vpop.f32.mrf.mxu0
        %v358 = vadd.f32 0.0, %v357
        %359 = vmatmul.f32.gmra.mxu0 %v292
        %v360 = vpop.f32.mrf.mxu0
        %v361 = vadd.f32 0.0, %v360
        %362 = vmatmul.f32.gmra.mxu0 %v295
        %v363 = vpop.f32.mrf.mxu0
        %v364 = vadd.f32 0.0, %v363
        %365 = vmatmul.f32.gmra.mxu0 %v298
        %v366 = vpop.f32.mrf.mxu0
        %v367 = vadd.f32 0.0, %v366
        %368 = vmatmul.f32.gmra.mxu0 %v301
        %v369 = vpop.f32.mrf.mxu0
        %v370 = vadd.f32 0.0, %v369
        %371 = vmatmul.f32.gmra.mxu0 %v304
        %v372 = vpop.f32.mrf.mxu0
        %v373 = vadd.f32 0.0, %v372
        %374 = vmatmul.f32.gmra.mxu0 %v307
        %v375 = vpop.f32.mrf.mxu0
        %v376 = vadd.f32 0.0, %v375
        %377 = vmatmul.f32.gmra.mxu0 %v310
        %v378 = vpop.f32.mrf.mxu0
        %v379 = vadd.f32 0.0, %v378
        %380 = vmatmul.f32.gmra.mxu0 %v313
        %v381 = vpop.f32.mrf.mxu0
        %v382 = vadd.f32 0.0, %v381
        %383 = vmatmul.f32.gmra.mxu0 %v316
        %v384 = vpop.f32.mrf.mxu0
        %v385 = vadd.f32 0.0, %v384
        %386 = vmatmul.f32.gmra.mxu0 %v319
        %v387 = vpop.f32.mrf.mxu0
        %v388 = vadd.f32 0.0, %v387
        %389 = vmatmul.f32.gmra.mxu0 %v322
        %v390 = vpop.f32.mrf.mxu0
        %v391 = vadd.f32 0.0, %v390
        %392 = vmatmul.f32.gmra.mxu0 %v325
        %v393 = vpop.f32.mrf.mxu0
        %v394 = vadd.f32 0.0, %v393
        %395 = vdwg.mxu0
        %397 = vrot.lane.b32.xlu0 %v349, 124
        %v398 = vpop.permute.xlu0 %397
        %vm399 = vcmask 31744
        %v400 = vsel %vm399, %v349, 0
        %v402 = vsel %vm399, %v398, 0
        %404 = vmatpush.xpose.msra.mxu0 0.0
        %405 = vmatpush.xpose.msra.mxu0 0.0
        %406 = vmatpush.xpose.msra.mxu0 0.0
        %407 = vmatpush.xpose.msra.mxu0 0.0
        %408 = vmatpush.xpose.msra.mxu0 0.0
        %409 = vmatpush.xpose.msra.mxu0 0.0
        %410 = vmatpush.xpose.msra.mxu0 0.0
        %411 = vmatpush.xpose.msra.mxu0 0.0
        %412 = vmatpush.xpose.msra.mxu0 0.0
        %413 = vmatpush.xpose.msra.mxu0 0.0
        %414 = vmatpush.xpose.msra.mxu0 0.0
        %415 = vmatpush.xpose.msra.mxu0 0.0
        %416 = vmatpush.xpose.msra.mxu0 0.0
        %417 = vmatpush.xpose.msra.mxu0 0.0
        %418 = vmatpush.xpose.msra.mxu0 0.0
        %419 = vmatpush.xpose.msra.mxu0 %v402
        %420 = vmatmul.f32.gmra.mxu0 %v400
        %v421 = vpop.f32.mrf.mxu0
        %v422 = vadd.f32 0.0, %v421
        %423 = vdwg.mxu0
        %425 = vrot.lane.b32.xlu0 %v352, 124
        %v426 = vpop.permute.xlu0 %425
        %v427 = vsel %vm399, %v352, 0
        %v429 = vsel %vm399, %v426, 0
        %431 = vmatpush.xpose.msra.mxu0 0.0
        %432 = vmatpush.xpose.msra.mxu0 0.0
        %433 = vmatpush.xpose.msra.mxu0 0.0
        %434 = vmatpush.xpose.msra.mxu0 0.0
        %435 = vmatpush.xpose.msra.mxu0 0.0
        %436 = vmatpush.xpose.msra.mxu0 0.0
        %437 = vmatpush.xpose.msra.mxu0 0.0
        %438 = vmatpush.xpose.msra.mxu0 0.0
        %439 = vmatpush.xpose.msra.mxu0 0.0
        %440 = vmatpush.xpose.msra.mxu0 0.0
        %441 = vmatpush.xpose.msra.mxu0 0.0
        %442 = vmatpush.xpose.msra.mxu0 0.0
        %443 = vmatpush.xpose.msra.mxu0 0.0
        %444 = vmatpush.xpose.msra.mxu0 0.0
        %445 = vmatpush.xpose.msra.mxu0 0.0
        %446 = vmatpush.xpose.msra.mxu0 %v429
        %447 = vmatmul.f32.gmra.mxu0 %v427
        %v448 = vpop.f32.mrf.mxu0
        %v449 = vadd.f32 0.0, %v448
        %450 = vdwg.mxu0
        %452 = vrot.lane.b32.xlu0 %v355, 124
        %v453 = vpop.permute.xlu0 %452
        %v454 = vsel %vm399, %v355, 0
        %v456 = vsel %vm399, %v453, 0
        %458 = vmatpush.xpose.msra.mxu0 0.0
        %459 = vmatpush.xpose.msra.mxu0 0.0
        %460 = vmatpush.xpose.msra.mxu0 0.0
        %461 = vmatpush.xpose.msra.mxu0 0.0
        %462 = vmatpush.xpose.msra.mxu0 0.0
        %463 = vmatpush.xpose.msra.mxu0 0.0
        %464 = vmatpush.xpose.msra.mxu0 0.0
        %465 = vmatpush.xpose.msra.mxu0 0.0
        %466 = vmatpush.xpose.msra.mxu0 0.0
        %467 = vmatpush.xpose.msra.mxu0 0.0
        %468 = vmatpush.xpose.msra.mxu0 0.0
        %469 = vmatpush.xpose.msra.mxu0 0.0
        %470 = vmatpush.xpose.msra.mxu0 0.0
        %471 = vmatpush.xpose.msra.mxu0 0.0
        %472 = vmatpush.xpose.msra.mxu0 0.0
        %473 = vmatpush.xpose.msra.mxu0 %v456
        %474 = vmatmul.f32.gmra.mxu0 %v454
        %v475 = vpop.f32.mrf.mxu0
        %v476 = vadd.f32 0.0, %v475
        %477 = vdwg.mxu0
        %479 = vrot.lane.b32.xlu0 %v358, 124
        %v480 = vpop.permute.xlu0 %479
        %v481 = vsel %vm399, %v358, 0
        %v483 = vsel %vm399, %v480, 0
        %485 = vmatpush.xpose.msra.mxu0 0.0
        %486 = vmatpush.xpose.msra.mxu0 0.0
        %487 = vmatpush.xpose.msra.mxu0 0.0
        %488 = vmatpush.xpose.msra.mxu0 0.0
        %489 = vmatpush.xpose.msra.mxu0 0.0
        %490 = vmatpush.xpose.msra.mxu0 0.0
        %491 = vmatpush.xpose.msra.mxu0 0.0
        %492 = vmatpush.xpose.msra.mxu0 0.0
        %493 = vmatpush.xpose.msra.mxu0 0.0
        %494 = vmatpush.xpose.msra.mxu0 0.0
        %495 = vmatpush.xpose.msra.mxu0 0.0
        %496 = vmatpush.xpose.msra.mxu0 0.0
        %497 = vmatpush.xpose.msra.mxu0 0.0
        %498 = vmatpush.xpose.msra.mxu0 0.0
        %499 = vmatpush.xpose.msra.mxu0 0.0
        %500 = vmatpush.xpose.msra.mxu0 %v483
        %501 = vmatmul.f32.gmra.mxu0 %v481
        %v502 = vpop.f32.mrf.mxu0
        %v503 = vadd.f32 0.0, %v502
        %504 = vdwg.mxu0
        %506 = vrot.lane.b32.xlu0 %v361, 124
        %v507 = vpop.permute.xlu0 %506
        %v508 = vsel %vm399, %v361, 0
        %v510 = vsel %vm399, %v507, 0
        %512 = vmatpush.xpose.msra.mxu0 0.0
        %513 = vmatpush.xpose.msra.mxu0 0.0
        %514 = vmatpush.xpose.msra.mxu0 0.0
        %515 = vmatpush.xpose.msra.mxu0 0.0
        %516 = vmatpush.xpose.msra.mxu0 0.0
        %517 = vmatpush.xpose.msra.mxu0 0.0
        %518 = vmatpush.xpose.msra.mxu0 0.0
        %519 = vmatpush.xpose.msra.mxu0 0.0
        %520 = vmatpush.xpose.msra.mxu0 0.0
        %521 = vmatpush.xpose.msra.mxu0 0.0
        %522 = vmatpush.xpose.msra.mxu0 0.0
        %523 = vmatpush.xpose.msra.mxu0 0.0
        %524 = vmatpush.xpose.msra.mxu0 0.0
        %525 = vmatpush.xpose.msra.mxu0 0.0
        %526 = vmatpush.xpose.msra.mxu0 0.0
        %527 = vmatpush.xpose.msra.mxu0 %v510
        %528 = vmatmul.f32.gmra.mxu0 %v508
        %v529 = vpop.f32.mrf.mxu0
        %v530 = vadd.f32 0.0, %v529
        %531 = vdwg.mxu0
        %533 = vrot.lane.b32.xlu0 %v364, 124
        %v534 = vpop.permute.xlu0 %533
        %v535 = vsel %vm399, %v364, 0
        %v537 = vsel %vm399, %v534, 0
        %539 = vmatpush.xpose.msra.mxu0 0.0
        %540 = vmatpush.xpose.msra.mxu0 0.0
        %541 = vmatpush.xpose.msra.mxu0 0.0
        %542 = vmatpush.xpose.msra.mxu0 0.0
        %543 = vmatpush.xpose.msra.mxu0 0.0
        %544 = vmatpush.xpose.msra.mxu0 0.0
        %545 = vmatpush.xpose.msra.mxu0 0.0
        %546 = vmatpush.xpose.msra.mxu0 0.0
        %547 = vmatpush.xpose.msra.mxu0 0.0
        %548 = vmatpush.xpose.msra.mxu0 0.0
        %549 = vmatpush.xpose.msra.mxu0 0.0
        %550 = vmatpush.xpose.msra.mxu0 0.0
        %551 = vmatpush.xpose.msra.mxu0 0.0
        %552 = vmatpush.xpose.msra.mxu0 0.0
        %553 = vmatpush.xpose.msra.mxu0 0.0
        %554 = vmatpush.xpose.msra.mxu0 %v537
        %555 = vmatmul.f32.gmra.mxu0 %v535
        %v556 = vpop.f32.mrf.mxu0
        %v557 = vadd.f32 0.0, %v556
        %558 = vdwg.mxu0
        %560 = vrot.lane.b32.xlu0 %v367, 124
        %v561 = vpop.permute.xlu0 %560
        %v562 = vsel %vm399, %v367, 0
        %v564 = vsel %vm399, %v561, 0
        %566 = vmatpush.xpose.msra.mxu0 0.0
        %567 = vmatpush.xpose.msra.mxu0 0.0
        %568 = vmatpush.xpose.msra.mxu0 0.0
        %569 = vmatpush.xpose.msra.mxu0 0.0
        %570 = vmatpush.xpose.msra.mxu0 0.0
        %571 = vmatpush.xpose.msra.mxu0 0.0
        %572 = vmatpush.xpose.msra.mxu0 0.0
        %573 = vmatpush.xpose.msra.mxu0 0.0
        %574 = vmatpush.xpose.msra.mxu0 0.0
        %575 = vmatpush.xpose.msra.mxu0 0.0
        %576 = vmatpush.xpose.msra.mxu0 0.0
        %577 = vmatpush.xpose.msra.mxu0 0.0
        %578 = vmatpush.xpose.msra.mxu0 0.0
        %579 = vmatpush.xpose.msra.mxu0 0.0
        %580 = vmatpush.xpose.msra.mxu0 0.0
        %581 = vmatpush.xpose.msra.mxu0 %v564
        %582 = vmatmul.f32.gmra.mxu0 %v562
        %v583 = vpop.f32.mrf.mxu0
        %v584 = vadd.f32 0.0, %v583
        %585 = vdwg.mxu0
        %587 = vrot.lane.b32.xlu0 %v370, 124
        %v588 = vpop.permute.xlu0 %587
        %v589 = vsel %vm399, %v370, 0
        %v591 = vsel %vm399, %v588, 0
        %593 = vmatpush.xpose.msra.mxu0 0.0
        %594 = vmatpush.xpose.msra.mxu0 0.0
        %595 = vmatpush.xpose.msra.mxu0 0.0
        %596 = vmatpush.xpose.msra.mxu0 0.0
        %597 = vmatpush.xpose.msra.mxu0 0.0
        %598 = vmatpush.xpose.msra.mxu0 0.0
        %599 = vmatpush.xpose.msra.mxu0 0.0
        %600 = vmatpush.xpose.msra.mxu0 0.0
        %601 = vmatpush.xpose.msra.mxu0 0.0
        %602 = vmatpush.xpose.msra.mxu0 0.0
        %603 = vmatpush.xpose.msra.mxu0 0.0
        %604 = vmatpush.xpose.msra.mxu0 0.0
        %605 = vmatpush.xpose.msra.mxu0 0.0
        %606 = vmatpush.xpose.msra.mxu0 0.0
        %607 = vmatpush.xpose.msra.mxu0 0.0
        %608 = vmatpush.xpose.msra.mxu0 %v591
        %609 = vmatmul.f32.gmra.mxu0 %v589
        %v610 = vpop.f32.mrf.mxu0
        %v611 = vadd.f32 0.0, %v610
        %612 = vdwg.mxu0
        %614 = vrot.lane.b32.xlu0 %v373, 124
        %v615 = vpop.permute.xlu0 %614
        %v616 = vsel %vm399, %v373, 0
        %v618 = vsel %vm399, %v615, 0
        %620 = vmatpush.xpose.msra.mxu0 0.0
        %621 = vmatpush.xpose.msra.mxu0 0.0
        %622 = vmatpush.xpose.msra.mxu0 0.0
        %623 = vmatpush.xpose.msra.mxu0 0.0
        %624 = vmatpush.xpose.msra.mxu0 0.0
        %625 = vmatpush.xpose.msra.mxu0 0.0
        %626 = vmatpush.xpose.msra.mxu0 0.0
        %627 = vmatpush.xpose.msra.mxu0 0.0
        %628 = vmatpush.xpose.msra.mxu0 0.0
        %629 = vmatpush.xpose.msra.mxu0 0.0
        %630 = vmatpush.xpose.msra.mxu0 0.0
        %631 = vmatpush.xpose.msra.mxu0 0.0
        %632 = vmatpush.xpose.msra.mxu0 0.0
        %633 = vmatpush.xpose.msra.mxu0 0.0
        %634 = vmatpush.xpose.msra.mxu0 0.0
        %635 = vmatpush.xpose.msra.mxu0 %v618
        %636 = vmatmul.f32.gmra.mxu0 %v616
        %v637 = vpop.f32.mrf.mxu0
        %v638 = vadd.f32 0.0, %v637
        %639 = vdwg.mxu0
        %641 = vrot.lane.b32.xlu0 %v376, 124
        %v642 = vpop.permute.xlu0 %641
        %v643 = vsel %vm399, %v376, 0
        %v645 = vsel %vm399, %v642, 0
        %647 = vmatpush.xpose.msra.mxu0 0.0
        %648 = vmatpush.xpose.msra.mxu0 0.0
        %649 = vmatpush.xpose.msra.mxu0 0.0
        %650 = vmatpush.xpose.msra.mxu0 0.0
        %651 = vmatpush.xpose.msra.mxu0 0.0
        %652 = vmatpush.xpose.msra.mxu0 0.0
        %653 = vmatpush.xpose.msra.mxu0 0.0
        %654 = vmatpush.xpose.msra.mxu0 0.0
        %655 = vmatpush.xpose.msra.mxu0 0.0
        %656 = vmatpush.xpose.msra.mxu0 0.0
        %657 = vmatpush.xpose.msra.mxu0 0.0
        %658 = vmatpush.xpose.msra.mxu0 0.0
        %659 = vmatpush.xpose.msra.mxu0 0.0
        %660 = vmatpush.xpose.msra.mxu0 0.0
        %661 = vmatpush.xpose.msra.mxu0 0.0
        %662 = vmatpush.xpose.msra.mxu0 %v645
        %663 = vmatmul.f32.gmra.mxu0 %v643
        %v664 = vpop.f32.mrf.mxu0
        %v665 = vadd.f32 0.0, %v664
        %666 = vdwg.mxu0
        %668 = vrot.lane.b32.xlu0 %v379, 124
        %v669 = vpop.permute.xlu0 %668
        %v670 = vsel %vm399, %v379, 0
        %v672 = vsel %vm399, %v669, 0
        %674 = vmatpush.xpose.msra.mxu0 0.0
        %675 = vmatpush.xpose.msra.mxu0 0.0
        %676 = vmatpush.xpose.msra.mxu0 0.0
        %677 = vmatpush.xpose.msra.mxu0 0.0
        %678 = vmatpush.xpose.msra.mxu0 0.0
        %679 = vmatpush.xpose.msra.mxu0 0.0
        %680 = vmatpush.xpose.msra.mxu0 0.0
        %681 = vmatpush.xpose.msra.mxu0 0.0
        %682 = vmatpush.xpose.msra.mxu0 0.0
        %683 = vmatpush.xpose.msra.mxu0 0.0
        %684 = vmatpush.xpose.msra.mxu0 0.0
        %685 = vmatpush.xpose.msra.mxu0 0.0
        %686 = vmatpush.xpose.msra.mxu0 0.0
        %687 = vmatpush.xpose.msra.mxu0 0.0
        %688 = vmatpush.xpose.msra.mxu0 0.0
        %689 = vmatpush.xpose.msra.mxu0 %v672
        %690 = vmatmul.f32.gmra.mxu0 %v670
        %v691 = vpop.f32.mrf.mxu0
        %v692 = vadd.f32 0.0, %v691
        %693 = vdwg.mxu0
        %695 = vrot.lane.b32.xlu0 %v382, 124
        %v696 = vpop.permute.xlu0 %695
        %v697 = vsel %vm399, %v382, 0
        %v699 = vsel %vm399, %v696, 0
        %701 = vmatpush.xpose.msra.mxu0 0.0
        %702 = vmatpush.xpose.msra.mxu0 0.0
        %703 = vmatpush.xpose.msra.mxu0 0.0
        %704 = vmatpush.xpose.msra.mxu0 0.0
        %705 = vmatpush.xpose.msra.mxu0 0.0
        %706 = vmatpush.xpose.msra.mxu0 0.0
        %707 = vmatpush.xpose.msra.mxu0 0.0
        %708 = vmatpush.xpose.msra.mxu0 0.0
        %709 = vmatpush.xpose.msra.mxu0 0.0
        %710 = vmatpush.xpose.msra.mxu0 0.0
        %711 = vmatpush.xpose.msra.mxu0 0.0
        %712 = vmatpush.xpose.msra.mxu0 0.0
        %713 = vmatpush.xpose.msra.mxu0 0.0
        %714 = vmatpush.xpose.msra.mxu0 0.0
        %715 = vmatpush.xpose.msra.mxu0 0.0
        %716 = vmatpush.xpose.msra.mxu0 %v699
        %717 = vmatmul.f32.gmra.mxu0 %v697
        %v718 = vpop.f32.mrf.mxu0
        %v719 = vadd.f32 0.0, %v718
        %720 = vdwg.mxu0
        %722 = vrot.lane.b32.xlu0 %v385, 124
        %v723 = vpop.permute.xlu0 %722
        %v724 = vsel %vm399, %v385, 0
        %v726 = vsel %vm399, %v723, 0
        %728 = vmatpush.xpose.msra.mxu0 0.0
        %729 = vmatpush.xpose.msra.mxu0 0.0
        %730 = vmatpush.xpose.msra.mxu0 0.0
        %731 = vmatpush.xpose.msra.mxu0 0.0
        %732 = vmatpush.xpose.msra.mxu0 0.0
        %733 = vmatpush.xpose.msra.mxu0 0.0
        %734 = vmatpush.xpose.msra.mxu0 0.0
        %735 = vmatpush.xpose.msra.mxu0 0.0
        %736 = vmatpush.xpose.msra.mxu0 0.0
        %737 = vmatpush.xpose.msra.mxu0 0.0
        %738 = vmatpush.xpose.msra.mxu0 0.0
        %739 = vmatpush.xpose.msra.mxu0 0.0
        %740 = vmatpush.xpose.msra.mxu0 0.0
        %741 = vmatpush.xpose.msra.mxu0 0.0
        %742 = vmatpush.xpose.msra.mxu0 0.0
        %743 = vmatpush.xpose.msra.mxu0 %v726
        %744 = vmatmul.f32.gmra.mxu0 %v724
        %v745 = vpop.f32.mrf.mxu0
        %v746 = vadd.f32 0.0, %v745
        %747 = vdwg.mxu0
        %749 = vrot.lane.b32.xlu0 %v388, 124
        %v750 = vpop.permute.xlu0 %749
        %v751 = vsel %vm399, %v388, 0
        %v753 = vsel %vm399, %v750, 0
        %755 = vmatpush.xpose.msra.mxu0 0.0
        %756 = vmatpush.xpose.msra.mxu0 0.0
        %757 = vmatpush.xpose.msra.mxu0 0.0
        %758 = vmatpush.xpose.msra.mxu0 0.0
        %759 = vmatpush.xpose.msra.mxu0 0.0
        %760 = vmatpush.xpose.msra.mxu0 0.0
        %761 = vmatpush.xpose.msra.mxu0 0.0
        %762 = vmatpush.xpose.msra.mxu0 0.0
        %763 = vmatpush.xpose.msra.mxu0 0.0
        %764 = vmatpush.xpose.msra.mxu0 0.0
        %765 = vmatpush.xpose.msra.mxu0 0.0
        %766 = vmatpush.xpose.msra.mxu0 0.0
        %767 = vmatpush.xpose.msra.mxu0 0.0
        %768 = vmatpush.xpose.msra.mxu0 0.0
        %769 = vmatpush.xpose.msra.mxu0 0.0
        %770 = vmatpush.xpose.msra.mxu0 %v753
        %771 = vmatmul.f32.gmra.mxu0 %v751
        %v772 = vpop.f32.mrf.mxu0
        %v773 = vadd.f32 0.0, %v772
        %774 = vdwg.mxu0
        %776 = vrot.lane.b32.xlu0 %v391, 124
        %v777 = vpop.permute.xlu0 %776
        %v778 = vsel %vm399, %v391, 0
        %v780 = vsel %vm399, %v777, 0
        %782 = vmatpush.xpose.msra.mxu0 0.0
        %783 = vmatpush.xpose.msra.mxu0 0.0
        %784 = vmatpush.xpose.msra.mxu0 0.0
        %785 = vmatpush.xpose.msra.mxu0 0.0
        %786 = vmatpush.xpose.msra.mxu0 0.0
        %787 = vmatpush.xpose.msra.mxu0 0.0
        %788 = vmatpush.xpose.msra.mxu0 0.0
        %789 = vmatpush.xpose.msra.mxu0 0.0
        %790 = vmatpush.xpose.msra.mxu0 0.0
        %791 = vmatpush.xpose.msra.mxu0 0.0
        %792 = vmatpush.xpose.msra.mxu0 0.0
        %793 = vmatpush.xpose.msra.mxu0 0.0
        %794 = vmatpush.xpose.msra.mxu0 0.0
        %795 = vmatpush.xpose.msra.mxu0 0.0
        %796 = vmatpush.xpose.msra.mxu0 0.0
        %797 = vmatpush.xpose.msra.mxu0 %v780
        %798 = vmatmul.f32.gmra.mxu0 %v778
        %v799 = vpop.f32.mrf.mxu0
        %v800 = vadd.f32 0.0, %v799
        %801 = vdwg.mxu0
        %803 = vrot.lane.b32.xlu0 %v394, 124
        %v804 = vpop.permute.xlu0 %803
        %v805 = vsel %vm399, %v394, 0
        %v807 = vsel %vm399, %v804, 0
        %809 = vmatpush.xpose.msra.mxu0 0.0
        %810 = vmatpush.xpose.msra.mxu0 0.0
        %811 = vmatpush.xpose.msra.mxu0 0.0
        %812 = vmatpush.xpose.msra.mxu0 0.0
        %813 = vmatpush.xpose.msra.mxu0 0.0
        %814 = vmatpush.xpose.msra.mxu0 0.0
        %815 = vmatpush.xpose.msra.mxu0 0.0
        %816 = vmatpush.xpose.msra.mxu0 0.0
        %817 = vmatpush.xpose.msra.mxu0 0.0
        %818 = vmatpush.xpose.msra.mxu0 0.0
        %819 = vmatpush.xpose.msra.mxu0 0.0
        %820 = vmatpush.xpose.msra.mxu0 0.0
        %821 = vmatpush.xpose.msra.mxu0 0.0
        %822 = vmatpush.xpose.msra.mxu0 0.0
        %823 = vmatpush.xpose.msra.mxu0 0.0
        %824 = vmatpush.xpose.msra.mxu0 %v807
        %825 = vmatmul.f32.gmra.mxu0 %v805
        %v826 = vpop.f32.mrf.mxu0
        %v827 = vadd.f32 0.0, %v826
        %828 = vdwg.mxu0
        %vm829 = vcmask 64512
        %v830 = vsel %vm829, %v422, -inf
        %831 = vmax.xlane.f32.xlu0 %v830
        %v832 = vpop.xlane.xlu0 %831
        %v833 = vsel %vm829, %v449, -inf
        %834 = vmax.xlane.f32.xlu0 %v833
        %v835 = vpop.xlane.xlu0 %834
        %v836 = vsel %vm829, %v476, -inf
        %837 = vmax.xlane.f32.xlu0 %v836
        %v838 = vpop.xlane.xlu0 %837
        %v839 = vsel %vm829, %v503, -inf
        %840 = vmax.xlane.f32.xlu0 %v839
        %v841 = vpop.xlane.xlu0 %840
        %v842 = vsel %vm829, %v530, -inf
        %843 = vmax.xlane.f32.xlu0 %v842
        %v844 = vpop.xlane.xlu0 %843
        %v845 = vsel %vm829, %v557, -inf
        %846 = vmax.xlane.f32.xlu0 %v845
        %v847 = vpop.xlane.xlu0 %846
        %v848 = vsel %vm829, %v584, -inf
        %849 = vmax.xlane.f32.xlu0 %v848
        %v850 = vpop.xlane.xlu0 %849
        %v851 = vsel %vm829, %v611, -inf
        %852 = vmax.xlane.f32.xlu0 %v851
        %v853 = vpop.xlane.xlu0 %852
        %v854 = vsel %vm829, %v638, -inf
        %855 = vmax.xlane.f32.xlu0 %v854
        %v856 = vpop.xlane.xlu0 %855
        %v857 = vsel %vm829, %v665, -inf
        %858 = vmax.xlane.f32.xlu0 %v857
        %v859 = vpop.xlane.xlu0 %858
        %v860 = vsel %vm829, %v692, -inf
        %861 = vmax.xlane.f32.xlu0 %v860
        %v862 = vpop.xlane.xlu0 %861
        %v863 = vsel %vm829, %v719, -inf
        %864 = vmax.xlane.f32.xlu0 %v863
        %v865 = vpop.xlane.xlu0 %864
        %v866 = vsel %vm829, %v746, -inf
        %867 = vmax.xlane.f32.xlu0 %v866
        %v868 = vpop.xlane.xlu0 %867
        %v869 = vsel %vm829, %v773, -inf
        %870 = vmax.xlane.f32.xlu0 %v869
        %v871 = vpop.xlane.xlu0 %870
        %v872 = vsel %vm829, %v800, -inf
        %873 = vmax.xlane.f32.xlu0 %v872
        %v874 = vpop.xlane.xlu0 %873
        %v875 = vsel %vm829, %v827, -inf
        %876 = vmax.xlane.f32.xlu0 %v875
        %v877 = vpop.xlane.xlu0 %876
        %v878 = vsub.f32 %v422, %v832
        %v879 = vsub.f32 %v449, %v835
        %v880 = vsub.f32 %v476, %v838
        %v881 = vsub.f32 %v503, %v841
        %v882 = vsub.f32 %v530, %v844
        %v883 = vsub.f32 %v557, %v847
        %v884 = vsub.f32 %v584, %v850
        %v885 = vsub.f32 %v611, %v853
        %v886 = vsub.f32 %v638, %v856
        %v887 = vsub.f32 %v665, %v859
        %v888 = vsub.f32 %v692, %v862
        %v889 = vsub.f32 %v719, %v865
        %v890 = vsub.f32 %v746, %v868
        %v891 = vsub.f32 %v773, %v871
        %v892 = vsub.f32 %v800, %v874
        %v893 = vsub.f32 %v827, %v877
        %v894 = vmul.f32 %v878, 1.442695
        %v895 = vpow.pop %v894
        %v896 = vmul.f32 %v879, 1.442695
        %v897 = vpow.pop %v896
        %v898 = vmul.f32 %v880, 1.442695
        %v899 = vpow.pop %v898
        %v900 = vmul.f32 %v881, 1.442695
        %v901 = vpow.pop %v900
        %v902 = vmul.f32 %v882, 1.442695
        %v903 = vpow.pop %v902
        %v904 = vmul.f32 %v883, 1.442695
        %v905 = vpow.pop %v904
        %v906 = vmul.f32 %v884, 1.442695
        %v907 = vpow.pop %v906
        %v908 = vmul.f32 %v885, 1.442695
        %v909 = vpow.pop %v908
        %v910 = vmul.f32 %v886, 1.442695
        %v911 = vpow.pop %v910
        %v912 = vmul.f32 %v887, 1.442695
        %v913 = vpow.pop %v912
        %v914 = vmul.f32 %v888, 1.442695
        %v915 = vpow.pop %v914
        %v916 = vmul.f32 %v889, 1.442695
        %v917 = vpow.pop %v916
        %v918 = vmul.f32 %v890, 1.442695
        %v919 = vpow.pop %v918
        %v920 = vmul.f32 %v891, 1.442695
        %v921 = vpow.pop %v920
        %v922 = vmul.f32 %v892, 1.442695
        %v923 = vpow.pop %v922
        %v924 = vmul.f32 %v893, 1.442695
        %v925 = vpow.pop %v924
        %v926 = vsel %vm829, %v895, 0.0
        %927 = vadd.xlane.f32.xlu0 %v926
        %v928 = vpop.xlane.xlu0 %927
        %v929 = vsel %vm829, %v897, 0.0
        %930 = vadd.xlane.f32.xlu0 %v929
        %v931 = vpop.xlane.xlu0 %930
        %v932 = vsel %vm829, %v899, 0.0
        %933 = vadd.xlane.f32.xlu0 %v932
        %v934 = vpop.xlane.xlu0 %933
        %v935 = vsel %vm829, %v901, 0.0
        %936 = vadd.xlane.f32.xlu0 %v935
        %v937 = vpop.xlane.xlu0 %936
        %v938 = vsel %vm829, %v903, 0.0
        %939 = vadd.xlane.f32.xlu0 %v938
        %v940 = vpop.xlane.xlu0 %939
        %v941 = vsel %vm829, %v905, 0.0
        %942 = vadd.xlane.f32.xlu0 %v941
        %v943 = vpop.xlane.xlu0 %942
        %v944 = vsel %vm829, %v907, 0.0
        %945 = vadd.xlane.f32.xlu0 %v944
        %v946 = vpop.xlane.xlu0 %945
        %v947 = vsel %vm829, %v909, 0.0
        %948 = vadd.xlane.f32.xlu0 %v947
        %v949 = vpop.xlane.xlu0 %948
        %v950 = vsel %vm829, %v911, 0.0
        %951 = vadd.xlane.f32.xlu0 %v950
        %v952 = vpop.xlane.xlu0 %951
        %v953 = vsel %vm829, %v913, 0.0
        %954 = vadd.xlane.f32.xlu0 %v953
        %v955 = vpop.xlane.xlu0 %954
        %v956 = vsel %vm829, %v915, 0.0
        %957 = vadd.xlane.f32.xlu0 %v956
        %v958 = vpop.xlane.xlu0 %957
        %v959 = vsel %vm829, %v917, 0.0
        %960 = vadd.xlane.f32.xlu0 %v959
        %v961 = vpop.xlane.xlu0 %960
        %v962 = vsel %vm829, %v919, 0.0
        %963 = vadd.xlane.f32.xlu0 %v962
        %v964 = vpop.xlane.xlu0 %963
        %v965 = vsel %vm829, %v921, 0.0
        %966 = vadd.xlane.f32.xlu0 %v965
        %v967 = vpop.xlane.xlu0 %966
        %v968 = vsel %vm829, %v923, 0.0
        %969 = vadd.xlane.f32.xlu0 %v968
        %v970 = vpop.xlane.xlu0 %969
        %v971 = vsel %vm829, %v925, 0.0
        %972 = vadd.xlane.f32.xlu0 %v971
        %v973 = vpop.xlane.xlu0 %972
        %v974 = vrcp.pop %v928
        %v975 = vmul.f32 %v928, %v974
        %v976 = vsub.f32 1.0, %v975
        %v977 = vmul.f32 %v974, %v976
        %v978 = vadd.f32 %v974, %v977
        %vm979 = vweird.f32 %v928
        %vm980 = vweird.f32 %v974
        %vm981 = vmor %vm979, %vm980
        %v982 = vsel %vm981, %v974, %v978
        %v983 = vand.u32 2147483647, %v928
        %vm984 = vcmp.eq.f32.partialorder %v983, 8.507059e+37
        %v985 = vand.u32 %v928, 2147483648
        %v986 = vor.u32 1.1754944e-38, %v985
        %v987 = vsel %vm984, %v986, %v982
        %v988 = vmul.f32 %v895, %v987
        %v989 = vrcp.pop %v931
        %v990 = vmul.f32 %v931, %v989
        %v991 = vsub.f32 1.0, %v990
        %v992 = vmul.f32 %v989, %v991
        %v993 = vadd.f32 %v989, %v992
        %vm994 = vweird.f32 %v931
        %vm995 = vweird.f32 %v989
        %vm996 = vmor %vm994, %vm995
        %v997 = vsel %vm996, %v989, %v993
        %v998 = vand.u32 2147483647, %v931
        %vm999 = vcmp.eq.f32.partialorder %v998, 8.507059e+37
        %v1000 = vand.u32 %v931, 2147483648
        %v1001 = vor.u32 1.1754944e-38, %v1000
        %v1002 = vsel %vm999, %v1001, %v997
        %v1003 = vmul.f32 %v897, %v1002
        %v1004 = vrcp.pop %v934
        %v1005 = vmul.f32 %v934, %v1004
        %v1006 = vsub.f32 1.0, %v1005
        %v1007 = vmul.f32 %v1004, %v1006
        %v1008 = vadd.f32 %v1004, %v1007
        %vm1009 = vweird.f32 %v934
        %vm1010 = vweird.f32 %v1004
        %vm1011 = vmor %vm1009, %vm1010
        %v1012 = vsel %vm1011, %v1004, %v1008
        %v1013 = vand.u32 2147483647, %v934
        %vm1014 = vcmp.eq.f32.partialorder %v1013, 8.507059e+37
        %v1015 = vand.u32 %v934, 2147483648
        %v1016 = vor.u32 1.1754944e-38, %v1015
        %v1017 = vsel %vm1014, %v1016, %v1012
        %v1018 = vmul.f32 %v899, %v1017
        %v1019 = vrcp.pop %v937
        %v1020 = vmul.f32 %v937, %v1019
        %v1021 = vsub.f32 1.0, %v1020
        %v1022 = vmul.f32 %v1019, %v1021
        %v1023 = vadd.f32 %v1019, %v1022
        %vm1024 = vweird.f32 %v937
        %vm1025 = vweird.f32 %v1019
        %vm1026 = vmor %vm1024, %vm1025
        %v1027 = vsel %vm1026, %v1019, %v1023
        %v1028 = vand.u32 2147483647, %v937
        %vm1029 = vcmp.eq.f32.partialorder %v1028, 8.507059e+37
        %v1030 = vand.u32 %v937, 2147483648
        %v1031 = vor.u32 1.1754944e-38, %v1030
        %v1032 = vsel %vm1029, %v1031, %v1027
        %v1033 = vmul.f32 %v901, %v1032
        %v1034 = vrcp.pop %v940
        %v1035 = vmul.f32 %v940, %v1034
        %v1036 = vsub.f32 1.0, %v1035
        %v1037 = vmul.f32 %v1034, %v1036
        %v1038 = vadd.f32 %v1034, %v1037
        %vm1039 = vweird.f32 %v940
        %vm1040 = vweird.f32 %v1034
        %vm1041 = vmor %vm1039, %vm1040
        %v1042 = vsel %vm1041, %v1034, %v1038
        %v1043 = vand.u32 2147483647, %v940
        %vm1044 = vcmp.eq.f32.partialorder %v1043, 8.507059e+37
        %v1045 = vand.u32 %v940, 2147483648
        %v1046 = vor.u32 1.1754944e-38, %v1045
        %v1047 = vsel %vm1044, %v1046, %v1042
        %v1048 = vmul.f32 %v903, %v1047
        %v1049 = vrcp.pop %v943
        %v1050 = vmul.f32 %v943, %v1049
        %v1051 = vsub.f32 1.0, %v1050
        %v1052 = vmul.f32 %v1049, %v1051
        %v1053 = vadd.f32 %v1049, %v1052
        %vm1054 = vweird.f32 %v943
        %vm1055 = vweird.f32 %v1049
        %vm1056 = vmor %vm1054, %vm1055
        %v1057 = vsel %vm1056, %v1049, %v1053
        %v1058 = vand.u32 2147483647, %v943
        %vm1059 = vcmp.eq.f32.partialorder %v1058, 8.507059e+37
        %v1060 = vand.u32 %v943, 2147483648
        %v1061 = vor.u32 1.1754944e-38, %v1060
        %v1062 = vsel %vm1059, %v1061, %v1057
        %v1063 = vmul.f32 %v905, %v1062
        %v1064 = vrcp.pop %v946
        %v1065 = vmul.f32 %v946, %v1064
        %v1066 = vsub.f32 1.0, %v1065
        %v1067 = vmul.f32 %v1064, %v1066
        %v1068 = vadd.f32 %v1064, %v1067
        %vm1069 = vweird.f32 %v946
        %vm1070 = vweird.f32 %v1064
        %vm1071 = vmor %vm1069, %vm1070
        %v1072 = vsel %vm1071, %v1064, %v1068
        %v1073 = vand.u32 2147483647, %v946
        %vm1074 = vcmp.eq.f32.partialorder %v1073, 8.507059e+37
        %v1075 = vand.u32 %v946, 2147483648
        %v1076 = vor.u32 1.1754944e-38, %v1075
        %v1077 = vsel %vm1074, %v1076, %v1072
        %v1078 = vmul.f32 %v907, %v1077
        %v1079 = vrcp.pop %v949
        %v1080 = vmul.f32 %v949, %v1079
        %v1081 = vsub.f32 1.0, %v1080
        %v1082 = vmul.f32 %v1079, %v1081
        %v1083 = vadd.f32 %v1079, %v1082
        %vm1084 = vweird.f32 %v949
        %vm1085 = vweird.f32 %v1079
        %vm1086 = vmor %vm1084, %vm1085
        %v1087 = vsel %vm1086, %v1079, %v1083
        %v1088 = vand.u32 2147483647, %v949
        %vm1089 = vcmp.eq.f32.partialorder %v1088, 8.507059e+37
        %v1090 = vand.u32 %v949, 2147483648
        %v1091 = vor.u32 1.1754944e-38, %v1090
        %v1092 = vsel %vm1089, %v1091, %v1087
        %v1093 = vmul.f32 %v909, %v1092
        %v1094 = vrcp.pop %v952
        %v1095 = vmul.f32 %v952, %v1094
        %v1096 = vsub.f32 1.0, %v1095
        %v1097 = vmul.f32 %v1094, %v1096
        %v1098 = vadd.f32 %v1094, %v1097
        %vm1099 = vweird.f32 %v952
        %vm1100 = vweird.f32 %v1094
        %vm1101 = vmor %vm1099, %vm1100
        %v1102 = vsel %vm1101, %v1094, %v1098
        %v1103 = vand.u32 2147483647, %v952
        %vm1104 = vcmp.eq.f32.partialorder %v1103, 8.507059e+37
        %v1105 = vand.u32 %v952, 2147483648
        %v1106 = vor.u32 1.1754944e-38, %v1105
        %v1107 = vsel %vm1104, %v1106, %v1102
        %v1108 = vmul.f32 %v911, %v1107
        %v1109 = vrcp.pop %v955
        %v1110 = vmul.f32 %v955, %v1109
        %v1111 = vsub.f32 1.0, %v1110
        %v1112 = vmul.f32 %v1109, %v1111
        %v1113 = vadd.f32 %v1109, %v1112
        %vm1114 = vweird.f32 %v955
        %vm1115 = vweird.f32 %v1109
        %vm1116 = vmor %vm1114, %vm1115
        %v1117 = vsel %vm1116, %v1109, %v1113
        %v1118 = vand.u32 2147483647, %v955
        %vm1119 = vcmp.eq.f32.partialorder %v1118, 8.507059e+37
        %v1120 = vand.u32 %v955, 2147483648
        %v1121 = vor.u32 1.1754944e-38, %v1120
        %v1122 = vsel %vm1119, %v1121, %v1117
        %v1123 = vmul.f32 %v913, %v1122
        %v1124 = vrcp.pop %v958
        %v1125 = vmul.f32 %v958, %v1124
        %v1126 = vsub.f32 1.0, %v1125
        %v1127 = vmul.f32 %v1124, %v1126
        %v1128 = vadd.f32 %v1124, %v1127
        %vm1129 = vweird.f32 %v958
        %vm1130 = vweird.f32 %v1124
        %vm1131 = vmor %vm1129, %vm1130
        %v1132 = vsel %vm1131, %v1124, %v1128
        %v1133 = vand.u32 2147483647, %v958
        %vm1134 = vcmp.eq.f32.partialorder %v1133, 8.507059e+37
        %v1135 = vand.u32 %v958, 2147483648
        %v1136 = vor.u32 1.1754944e-38, %v1135
        %v1137 = vsel %vm1134, %v1136, %v1132
        %v1138 = vmul.f32 %v915, %v1137
        %v1139 = vrcp.pop %v961
        %v1140 = vmul.f32 %v961, %v1139
        %v1141 = vsub.f32 1.0, %v1140
        %v1142 = vmul.f32 %v1139, %v1141
        %v1143 = vadd.f32 %v1139, %v1142
        %vm1144 = vweird.f32 %v961
        %vm1145 = vweird.f32 %v1139
        %vm1146 = vmor %vm1144, %vm1145
        %v1147 = vsel %vm1146, %v1139, %v1143
        %v1148 = vand.u32 2147483647, %v961
        %vm1149 = vcmp.eq.f32.partialorder %v1148, 8.507059e+37
        %v1150 = vand.u32 %v961, 2147483648
        %v1151 = vor.u32 1.1754944e-38, %v1150
        %v1152 = vsel %vm1149, %v1151, %v1147
        %v1153 = vmul.f32 %v917, %v1152
        %v1154 = vrcp.pop %v964
        %v1155 = vmul.f32 %v964, %v1154
        %v1156 = vsub.f32 1.0, %v1155
        %v1157 = vmul.f32 %v1154, %v1156
        %v1158 = vadd.f32 %v1154, %v1157
        %vm1159 = vweird.f32 %v964
        %vm1160 = vweird.f32 %v1154
        %vm1161 = vmor %vm1159, %vm1160
        %v1162 = vsel %vm1161, %v1154, %v1158
        %v1163 = vand.u32 2147483647, %v964
        %vm1164 = vcmp.eq.f32.partialorder %v1163, 8.507059e+37
        %v1165 = vand.u32 %v964, 2147483648
        %v1166 = vor.u32 1.1754944e-38, %v1165
        %v1167 = vsel %vm1164, %v1166, %v1162
        %v1168 = vmul.f32 %v919, %v1167
        %v1169 = vrcp.pop %v967
        %v1170 = vmul.f32 %v967, %v1169
        %v1171 = vsub.f32 1.0, %v1170
        %v1172 = vmul.f32 %v1169, %v1171
        %v1173 = vadd.f32 %v1169, %v1172
        %vm1174 = vweird.f32 %v967
        %vm1175 = vweird.f32 %v1169
        %vm1176 = vmor %vm1174, %vm1175
        %v1177 = vsel %vm1176, %v1169, %v1173
        %v1178 = vand.u32 2147483647, %v967
        %vm1179 = vcmp.eq.f32.partialorder %v1178, 8.507059e+37
        %v1180 = vand.u32 %v967, 2147483648
        %v1181 = vor.u32 1.1754944e-38, %v1180
        %v1182 = vsel %vm1179, %v1181, %v1177
        %v1183 = vmul.f32 %v921, %v1182
        %v1184 = vrcp.pop %v970
        %v1185 = vmul.f32 %v970, %v1184
        %v1186 = vsub.f32 1.0, %v1185
        %v1187 = vmul.f32 %v1184, %v1186
        %v1188 = vadd.f32 %v1184, %v1187
        %vm1189 = vweird.f32 %v970
        %vm1190 = vweird.f32 %v1184
        %vm1191 = vmor %vm1189, %vm1190
        %v1192 = vsel %vm1191, %v1184, %v1188
        %v1193 = vand.u32 2147483647, %v970
        %vm1194 = vcmp.eq.f32.partialorder %v1193, 8.507059e+37
        %v1195 = vand.u32 %v970, 2147483648
        %v1196 = vor.u32 1.1754944e-38, %v1195
        %v1197 = vsel %vm1194, %v1196, %v1192
        %v1198 = vmul.f32 %v923, %v1197
        %v1199 = vrcp.pop %v973
        %v1200 = vmul.f32 %v973, %v1199
        %v1201 = vsub.f32 1.0, %v1200
        %v1202 = vmul.f32 %v1199, %v1201
        %v1203 = vadd.f32 %v1199, %v1202
        %vm1204 = vweird.f32 %v973
        %vm1205 = vweird.f32 %v1199
        %vm1206 = vmor %vm1204, %vm1205
        %v1207 = vsel %vm1206, %v1199, %v1203
        %v1208 = vand.u32 2147483647, %v973
        %vm1209 = vcmp.eq.f32.partialorder %v1208, 8.507059e+37
        %v1210 = vand.u32 %v973, 2147483648
        %v1211 = vor.u32 1.1754944e-38, %v1210
        %v1212 = vsel %vm1209, %v1211, %v1207
        %v1213 = vmul.f32 %v925, %v1212
        %1214 = vrot.lane.b32.xlu0 %v349, 120
        %v1215 = vpop.permute.xlu0 %1214
        %v1218 = vsel %vm829, %v988, 0
        %1220 = vmatpush.msra.mxu0 0.0
        %1221 = vmatpush.msra.mxu0 0.0
        %1222 = vmatpush.msra.mxu0 0.0
        %1223 = vmatpush.msra.mxu0 0.0
        %1224 = vmatpush.msra.mxu0 0.0
        %1225 = vmatpush.msra.mxu0 0.0
        %1226 = vmatpush.msra.mxu0 0.0
        %1227 = vmatpush.msra.mxu0 0.0
        %1228 = vmatpush.msra.mxu0 0.0
        %1229 = vmatpush.msra.mxu0 0.0
        %1230 = vmatpush.msra.mxu0 0.0
        %1231 = vmatpush.msra.mxu0 0.0
        %1232 = vmatpush.msra.mxu0 0.0
        %1233 = vmatpush.msra.mxu0 0.0
        %1234 = vmatpush.msra.mxu0 0.0
        %1235 = vmatpush.msra.mxu0 %v1215
        %1236 = vmatmul.f32.gmra.mxu0 %v1218
        %v1237 = vpop.f32.mrf.mxu0
        %v1238 = vadd.f32 0.0, %v1237
        %1239 = vdwg.mxu0
        %1240 = vrot.lane.b32.xlu0 %v352, 120
        %v1241 = vpop.permute.xlu0 %1240
        %v1244 = vsel %vm829, %v1003, 0
        %1246 = vmatpush.msra.mxu0 0.0
        %1247 = vmatpush.msra.mxu0 0.0
        %1248 = vmatpush.msra.mxu0 0.0
        %1249 = vmatpush.msra.mxu0 0.0
        %1250 = vmatpush.msra.mxu0 0.0
        %1251 = vmatpush.msra.mxu0 0.0
        %1252 = vmatpush.msra.mxu0 0.0
        %1253 = vmatpush.msra.mxu0 0.0
        %1254 = vmatpush.msra.mxu0 0.0
        %1255 = vmatpush.msra.mxu0 0.0
        %1256 = vmatpush.msra.mxu0 0.0
        %1257 = vmatpush.msra.mxu0 0.0
        %1258 = vmatpush.msra.mxu0 0.0
        %1259 = vmatpush.msra.mxu0 0.0
        %1260 = vmatpush.msra.mxu0 0.0
        %1261 = vmatpush.msra.mxu0 %v1241
        %1262 = vmatmul.f32.gmra.mxu0 %v1244
        %v1263 = vpop.f32.mrf.mxu0
        %v1264 = vadd.f32 0.0, %v1263
        %1265 = vdwg.mxu0
        %1266 = vrot.lane.b32.xlu0 %v355, 120
        %v1267 = vpop.permute.xlu0 %1266
        %v1270 = vsel %vm829, %v1018, 0
        %1272 = vmatpush.msra.mxu0 0.0
        %1273 = vmatpush.msra.mxu0 0.0
        %1274 = vmatpush.msra.mxu0 0.0
        %1275 = vmatpush.msra.mxu0 0.0
        %1276 = vmatpush.msra.mxu0 0.0
        %1277 = vmatpush.msra.mxu0 0.0
        %1278 = vmatpush.msra.mxu0 0.0
        %1279 = vmatpush.msra.mxu0 0.0
        %1280 = vmatpush.msra.mxu0 0.0
        %1281 = vmatpush.msra.mxu0 0.0
        %1282 = vmatpush.msra.mxu0 0.0
        %1283 = vmatpush.msra.mxu0 0.0
        %1284 = vmatpush.msra.mxu0 0.0
        %1285 = vmatpush.msra.mxu0 0.0
        %1286 = vmatpush.msra.mxu0 0.0
        %1287 = vmatpush.msra.mxu0 %v1267
        %1288 = vmatmul.f32.gmra.mxu0 %v1270
        %v1289 = vpop.f32.mrf.mxu0
        %v1290 = vadd.f32 0.0, %v1289
        %1291 = vdwg.mxu0
        %1292 = vrot.lane.b32.xlu0 %v358, 120
        %v1293 = vpop.permute.xlu0 %1292
        %v1296 = vsel %vm829, %v1033, 0
        %1298 = vmatpush.msra.mxu0 0.0
        %1299 = vmatpush.msra.mxu0 0.0
        %1300 = vmatpush.msra.mxu0 0.0
        %1301 = vmatpush.msra.mxu0 0.0
        %1302 = vmatpush.msra.mxu0 0.0
        %1303 = vmatpush.msra.mxu0 0.0
        %1304 = vmatpush.msra.mxu0 0.0
        %1305 = vmatpush.msra.mxu0 0.0
        %1306 = vmatpush.msra.mxu0 0.0
        %1307 = vmatpush.msra.mxu0 0.0
        %1308 = vmatpush.msra.mxu0 0.0
        %1309 = vmatpush.msra.mxu0 0.0
        %1310 = vmatpush.msra.mxu0 0.0
        %1311 = vmatpush.msra.mxu0 0.0
        %1312 = vmatpush.msra.mxu0 0.0
        %1313 = vmatpush.msra.mxu0 %v1293
        %1314 = vmatmul.f32.gmra.mxu0 %v1296
        %v1315 = vpop.f32.mrf.mxu0
        %v1316 = vadd.f32 0.0, %v1315
        %1317 = vdwg.mxu0
        %1318 = vrot.lane.b32.xlu0 %v361, 120
        %v1319 = vpop.permute.xlu0 %1318
        %v1322 = vsel %vm829, %v1048, 0
        %1324 = vmatpush.msra.mxu0 0.0
        %1325 = vmatpush.msra.mxu0 0.0
        %1326 = vmatpush.msra.mxu0 0.0
        %1327 = vmatpush.msra.mxu0 0.0
        %1328 = vmatpush.msra.mxu0 0.0
        %1329 = vmatpush.msra.mxu0 0.0
        %1330 = vmatpush.msra.mxu0 0.0
        %1331 = vmatpush.msra.mxu0 0.0
        %1332 = vmatpush.msra.mxu0 0.0
        %1333 = vmatpush.msra.mxu0 0.0
        %1334 = vmatpush.msra.mxu0 0.0
        %1335 = vmatpush.msra.mxu0 0.0
        %1336 = vmatpush.msra.mxu0 0.0
        %1337 = vmatpush.msra.mxu0 0.0
        %1338 = vmatpush.msra.mxu0 0.0
        %1339 = vmatpush.msra.mxu0 %v1319
        %1340 = vmatmul.f32.gmra.mxu0 %v1322
        %v1341 = vpop.f32.mrf.mxu0
        %v1342 = vadd.f32 0.0, %v1341
        %1343 = vdwg.mxu0
        %1344 = vrot.lane.b32.xlu0 %v364, 120
        %v1345 = vpop.permute.xlu0 %1344
        %v1348 = vsel %vm829, %v1063, 0
        %1350 = vmatpush.msra.mxu0 0.0
        %1351 = vmatpush.msra.mxu0 0.0
        %1352 = vmatpush.msra.mxu0 0.0
        %1353 = vmatpush.msra.mxu0 0.0
        %1354 = vmatpush.msra.mxu0 0.0
        %1355 = vmatpush.msra.mxu0 0.0
        %1356 = vmatpush.msra.mxu0 0.0
        %1357 = vmatpush.msra.mxu0 0.0
        %1358 = vmatpush.msra.mxu0 0.0
        %1359 = vmatpush.msra.mxu0 0.0
        %1360 = vmatpush.msra.mxu0 0.0
        %1361 = vmatpush.msra.mxu0 0.0
        %1362 = vmatpush.msra.mxu0 0.0
        %1363 = vmatpush.msra.mxu0 0.0
        %1364 = vmatpush.msra.mxu0 0.0
        %1365 = vmatpush.msra.mxu0 %v1345
        %1366 = vmatmul.f32.gmra.mxu0 %v1348
        %v1367 = vpop.f32.mrf.mxu0
        %v1368 = vadd.f32 0.0, %v1367
        %1369 = vdwg.mxu0
        %1370 = vrot.lane.b32.xlu0 %v367, 120
        %v1371 = vpop.permute.xlu0 %1370
        %v1374 = vsel %vm829, %v1078, 0
        %1376 = vmatpush.msra.mxu0 0.0
        %1377 = vmatpush.msra.mxu0 0.0
        %1378 = vmatpush.msra.mxu0 0.0
        %1379 = vmatpush.msra.mxu0 0.0
        %1380 = vmatpush.msra.mxu0 0.0
        %1381 = vmatpush.msra.mxu0 0.0
        %1382 = vmatpush.msra.mxu0 0.0
        %1383 = vmatpush.msra.mxu0 0.0
        %1384 = vmatpush.msra.mxu0 0.0
        %1385 = vmatpush.msra.mxu0 0.0
        %1386 = vmatpush.msra.mxu0 0.0
        %1387 = vmatpush.msra.mxu0 0.0
        %1388 = vmatpush.msra.mxu0 0.0
        %1389 = vmatpush.msra.mxu0 0.0
        %1390 = vmatpush.msra.mxu0 0.0
        %1391 = vmatpush.msra.mxu0 %v1371
        %1392 = vmatmul.f32.gmra.mxu0 %v1374
        %v1393 = vpop.f32.mrf.mxu0
        %v1394 = vadd.f32 0.0, %v1393
        %1395 = vdwg.mxu0
        %1396 = vrot.lane.b32.xlu0 %v370, 120
        %v1397 = vpop.permute.xlu0 %1396
        %v1400 = vsel %vm829, %v1093, 0
        %1402 = vmatpush.msra.mxu0 0.0
        %1403 = vmatpush.msra.mxu0 0.0
        %1404 = vmatpush.msra.mxu0 0.0
        %1405 = vmatpush.msra.mxu0 0.0
        %1406 = vmatpush.msra.mxu0 0.0
        %1407 = vmatpush.msra.mxu0 0.0
        %1408 = vmatpush.msra.mxu0 0.0
        %1409 = vmatpush.msra.mxu0 0.0
        %1410 = vmatpush.msra.mxu0 0.0
        %1411 = vmatpush.msra.mxu0 0.0
        %1412 = vmatpush.msra.mxu0 0.0
        %1413 = vmatpush.msra.mxu0 0.0
        %1414 = vmatpush.msra.mxu0 0.0
        %1415 = vmatpush.msra.mxu0 0.0
        %1416 = vmatpush.msra.mxu0 0.0
        %1417 = vmatpush.msra.mxu0 %v1397
        %1418 = vmatmul.f32.gmra.mxu0 %v1400
        %v1419 = vpop.f32.mrf.mxu0
        %v1420 = vadd.f32 0.0, %v1419
        %1421 = vdwg.mxu0
        %1422 = vrot.lane.b32.xlu0 %v373, 120
        %v1423 = vpop.permute.xlu0 %1422
        %v1426 = vsel %vm829, %v1108, 0
        %1428 = vmatpush.msra.mxu0 0.0
        %1429 = vmatpush.msra.mxu0 0.0
        %1430 = vmatpush.msra.mxu0 0.0
        %1431 = vmatpush.msra.mxu0 0.0
        %1432 = vmatpush.msra.mxu0 0.0
        %1433 = vmatpush.msra.mxu0 0.0
        %1434 = vmatpush.msra.mxu0 0.0
        %1435 = vmatpush.msra.mxu0 0.0
        %1436 = vmatpush.msra.mxu0 0.0
        %1437 = vmatpush.msra.mxu0 0.0
        %1438 = vmatpush.msra.mxu0 0.0
        %1439 = vmatpush.msra.mxu0 0.0
        %1440 = vmatpush.msra.mxu0 0.0
        %1441 = vmatpush.msra.mxu0 0.0
        %1442 = vmatpush.msra.mxu0 0.0
        %1443 = vmatpush.msra.mxu0 %v1423
        %1444 = vmatmul.f32.gmra.mxu0 %v1426
        %v1445 = vpop.f32.mrf.mxu0
        %v1446 = vadd.f32 0.0, %v1445
        %1447 = vdwg.mxu0
        %1448 = vrot.lane.b32.xlu0 %v376, 120
        %v1449 = vpop.permute.xlu0 %1448
        %v1452 = vsel %vm829, %v1123, 0
        %1454 = vmatpush.msra.mxu0 0.0
        %1455 = vmatpush.msra.mxu0 0.0
        %1456 = vmatpush.msra.mxu0 0.0
        %1457 = vmatpush.msra.mxu0 0.0
        %1458 = vmatpush.msra.mxu0 0.0
        %1459 = vmatpush.msra.mxu0 0.0
        %1460 = vmatpush.msra.mxu0 0.0
        %1461 = vmatpush.msra.mxu0 0.0
        %1462 = vmatpush.msra.mxu0 0.0
        %1463 = vmatpush.msra.mxu0 0.0
        %1464 = vmatpush.msra.mxu0 0.0
        %1465 = vmatpush.msra.mxu0 0.0
        %1466 = vmatpush.msra.mxu0 0.0
        %1467 = vmatpush.msra.mxu0 0.0
        %1468 = vmatpush.msra.mxu0 0.0
        %1469 = vmatpush.msra.mxu0 %v1449
        %1470 = vmatmul.f32.gmra.mxu0 %v1452
        %v1471 = vpop.f32.mrf.mxu0
        %v1472 = vadd.f32 0.0, %v1471
        %1473 = vdwg.mxu0
        %1474 = vrot.lane.b32.xlu0 %v379, 120
        %v1475 = vpop.permute.xlu0 %1474
        %v1478 = vsel %vm829, %v1138, 0
        %1480 = vmatpush.msra.mxu0 0.0
        %1481 = vmatpush.msra.mxu0 0.0
        %1482 = vmatpush.msra.mxu0 0.0
        %1483 = vmatpush.msra.mxu0 0.0
        %1484 = vmatpush.msra.mxu0 0.0
        %1485 = vmatpush.msra.mxu0 0.0
        %1486 = vmatpush.msra.mxu0 0.0
        %1487 = vmatpush.msra.mxu0 0.0
        %1488 = vmatpush.msra.mxu0 0.0
        %1489 = vmatpush.msra.mxu0 0.0
        %1490 = vmatpush.msra.mxu0 0.0
        %1491 = vmatpush.msra.mxu0 0.0
        %1492 = vmatpush.msra.mxu0 0.0
        %1493 = vmatpush.msra.mxu0 0.0
        %1494 = vmatpush.msra.mxu0 0.0
        %1495 = vmatpush.msra.mxu0 %v1475
        %1496 = vmatmul.f32.gmra.mxu0 %v1478
        %v1497 = vpop.f32.mrf.mxu0
        %v1498 = vadd.f32 0.0, %v1497
        %1499 = vdwg.mxu0
        %1500 = vrot.lane.b32.xlu0 %v382, 120
        %v1501 = vpop.permute.xlu0 %1500
        %v1504 = vsel %vm829, %v1153, 0
        %1506 = vmatpush.msra.mxu0 0.0
        %1507 = vmatpush.msra.mxu0 0.0
        %1508 = vmatpush.msra.mxu0 0.0
        %1509 = vmatpush.msra.mxu0 0.0
        %1510 = vmatpush.msra.mxu0 0.0
        %1511 = vmatpush.msra.mxu0 0.0
        %1512 = vmatpush.msra.mxu0 0.0
        %1513 = vmatpush.msra.mxu0 0.0
        %1514 = vmatpush.msra.mxu0 0.0
        %1515 = vmatpush.msra.mxu0 0.0
        %1516 = vmatpush.msra.mxu0 0.0
        %1517 = vmatpush.msra.mxu0 0.0
        %1518 = vmatpush.msra.mxu0 0.0
        %1519 = vmatpush.msra.mxu0 0.0
        %1520 = vmatpush.msra.mxu0 0.0
        %1521 = vmatpush.msra.mxu0 %v1501
        %1522 = vmatmul.f32.gmra.mxu0 %v1504
        %v1523 = vpop.f32.mrf.mxu0
        %v1524 = vadd.f32 0.0, %v1523
        %1525 = vdwg.mxu0
        %1526 = vrot.lane.b32.xlu0 %v385, 120
        %v1527 = vpop.permute.xlu0 %1526
        %v1530 = vsel %vm829, %v1168, 0
        %1532 = vmatpush.msra.mxu0 0.0
        %1533 = vmatpush.msra.mxu0 0.0
        %1534 = vmatpush.msra.mxu0 0.0
        %1535 = vmatpush.msra.mxu0 0.0
        %1536 = vmatpush.msra.mxu0 0.0
        %1537 = vmatpush.msra.mxu0 0.0
        %1538 = vmatpush.msra.mxu0 0.0
        %1539 = vmatpush.msra.mxu0 0.0
        %1540 = vmatpush.msra.mxu0 0.0
        %1541 = vmatpush.msra.mxu0 0.0
        %1542 = vmatpush.msra.mxu0 0.0
        %1543 = vmatpush.msra.mxu0 0.0
        %1544 = vmatpush.msra.mxu0 0.0
        %1545 = vmatpush.msra.mxu0 0.0
        %1546 = vmatpush.msra.mxu0 0.0
        %1547 = vmatpush.msra.mxu0 %v1527
        %1548 = vmatmul.f32.gmra.mxu0 %v1530
        %v1549 = vpop.f32.mrf.mxu0
        %v1550 = vadd.f32 0.0, %v1549
        %1551 = vdwg.mxu0
        %1552 = vrot.lane.b32.xlu0 %v388, 120
        %v1553 = vpop.permute.xlu0 %1552
        %v1556 = vsel %vm829, %v1183, 0
        %1558 = vmatpush.msra.mxu0 0.0
        %1559 = vmatpush.msra.mxu0 0.0
        %1560 = vmatpush.msra.mxu0 0.0
        %1561 = vmatpush.msra.mxu0 0.0
        %1562 = vmatpush.msra.mxu0 0.0
        %1563 = vmatpush.msra.mxu0 0.0
        %1564 = vmatpush.msra.mxu0 0.0
        %1565 = vmatpush.msra.mxu0 0.0
        %1566 = vmatpush.msra.mxu0 0.0
        %1567 = vmatpush.msra.mxu0 0.0
        %1568 = vmatpush.msra.mxu0 0.0
        %1569 = vmatpush.msra.mxu0 0.0
        %1570 = vmatpush.msra.mxu0 0.0
        %1571 = vmatpush.msra.mxu0 0.0
        %1572 = vmatpush.msra.mxu0 0.0
        %1573 = vmatpush.msra.mxu0 %v1553
        %1574 = vmatmul.f32.gmra.mxu0 %v1556
        %v1575 = vpop.f32.mrf.mxu0
        %v1576 = vadd.f32 0.0, %v1575
        %1577 = vdwg.mxu0
        %1578 = vrot.lane.b32.xlu0 %v391, 120
        %v1579 = vpop.permute.xlu0 %1578
        %v1582 = vsel %vm829, %v1198, 0
        %1584 = vmatpush.msra.mxu0 0.0
        %1585 = vmatpush.msra.mxu0 0.0
        %1586 = vmatpush.msra.mxu0 0.0
        %1587 = vmatpush.msra.mxu0 0.0
        %1588 = vmatpush.msra.mxu0 0.0
        %1589 = vmatpush.msra.mxu0 0.0
        %1590 = vmatpush.msra.mxu0 0.0
        %1591 = vmatpush.msra.mxu0 0.0
        %1592 = vmatpush.msra.mxu0 0.0
        %1593 = vmatpush.msra.mxu0 0.0
        %1594 = vmatpush.msra.mxu0 0.0
        %1595 = vmatpush.msra.mxu0 0.0
        %1596 = vmatpush.msra.mxu0 0.0
        %1597 = vmatpush.msra.mxu0 0.0
        %1598 = vmatpush.msra.mxu0 0.0
        %1599 = vmatpush.msra.mxu0 %v1579
        %1600 = vmatmul.f32.gmra.mxu0 %v1582
        %v1601 = vpop.f32.mrf.mxu0
        %v1602 = vadd.f32 0.0, %v1601
        %1603 = vdwg.mxu0
        %1604 = vrot.lane.b32.xlu0 %v394, 120
        %v1605 = vpop.permute.xlu0 %1604
        %v1608 = vsel %vm829, %v1213, 0
        %1610 = vmatpush.msra.mxu0 0.0
        %1611 = vmatpush.msra.mxu0 0.0
        %1612 = vmatpush.msra.mxu0 0.0
        %1613 = vmatpush.msra.mxu0 0.0
        %1614 = vmatpush.msra.mxu0 0.0
        %1615 = vmatpush.msra.mxu0 0.0
        %1616 = vmatpush.msra.mxu0 0.0
        %1617 = vmatpush.msra.mxu0 0.0
        %1618 = vmatpush.msra.mxu0 0.0
        %1619 = vmatpush.msra.mxu0 0.0
        %1620 = vmatpush.msra.mxu0 0.0
        %1621 = vmatpush.msra.mxu0 0.0
        %1622 = vmatpush.msra.mxu0 0.0
        %1623 = vmatpush.msra.mxu0 0.0
        %1624 = vmatpush.msra.mxu0 0.0
        %1625 = vmatpush.msra.mxu0 %v1605
        %1626 = vmatmul.f32.gmra.mxu0 %v1608
        %v1627 = vpop.f32.mrf.mxu0
        %v1628 = vadd.f32 0.0, %v1627
        %1629 = vdwg.mxu0
        %v1630 = vsel %vm399, %v1238, 0.0
        %v1631 = vsel %vm399, %v1264, 0.0
        %v1632 = vsel %vm399, %v1290, 0.0
        %v1633 = vsel %vm399, %v1316, 0.0
        %v1634 = vsel %vm399, %v1342, 0.0
        %v1635 = vsel %vm399, %v1368, 0.0
        %v1636 = vsel %vm399, %v1394, 0.0
        %v1637 = vsel %vm399, %v1420, 0.0
        %v1638 = vsel %vm399, %v1446, 0.0
        %v1639 = vsel %vm399, %v1472, 0.0
        %v1640 = vsel %vm399, %v1498, 0.0
        %v1641 = vsel %vm399, %v1524, 0.0
        %v1642 = vsel %vm399, %v1550, 0.0
        %v1643 = vsel %vm399, %v1576, 0.0
        %v1644 = vsel %vm399, %v1602, 0.0
        %v1645 = vsel %vm399, %v1628, 0.0
        %1646 = vst [vmem:[%s137] sm:$0xff] %v1630
        %1647 = vst [vmem:[%s137 + $0x8] sm:$0xff] %v1631
        %1648 = vst [vmem:[%s137 + $0x10] sm:$0xff] %v1632
        %1649 = vst [vmem:[%s137 + $0x18] sm:$0xff] %v1633
        %1650 = vst [vmem:[%s137 + $0x20] sm:$0xff] %v1634
        %1651 = vst [vmem:[%s137 + $0x28] sm:$0xff] %v1635
        %1652 = vst [vmem:[%s137 + $0x30] sm:$0xff] %v1636
        %1653 = vst [vmem:[%s137 + $0x38] sm:$0xff] %v1637
        %1654 = vst [vmem:[%s137 + $0x40] sm:$0xff] %v1638
        %1655 = vst [vmem:[%s137 + $0x48] sm:$0xff] %v1639
        %1656 = vst [vmem:[%s137 + $0x50] sm:$0xff] %v1640
        %1657 = vst [vmem:[%s137 + $0x58] sm:$0xff] %v1641
        %1658 = vst [vmem:[%s137 + $0x60] sm:$0xff] %v1642
        %1659 = vst [vmem:[%s137 + $0x68] sm:$0xff] %v1643
        %1660 = vst [vmem:[%s137 + $0x70] sm:$0xff] %v1644
        %1661 = vst [vmem:[%s137 + $0x78] sm:$0xff] %v1645
        %s1662 = sand.u32 %s71, 1
        %s1663 = scalar_lea.sflag [#allocation3], %s1662
        %s1664 = sand.u32 %s71, 1
        %s1665 = smul.addr %s1664, 128
        %s1666 = scalar_lea.vmem [#allocation2], %s1665
        // Predicated region
        $region29: #{tpu_custom_call.1} parent=27 // pred_check
          %p1667 = pneg %p81
        $region30: #{tpu_custom_call.1} parent=27 // pred_check_branch
          %1669 = sbr.rel (%p1667) target = $region32
        $region31: #{tpu_custom_call.1} parent=27 // pred_region
          %s1670 = smul.u32 16, %s16
          %1672 = vsyncadd %s1663, 0
          %s1673 = smul.addr %s1670, 8
          %s1674 = scalar_lea.hbm %s2, %s1673
          %s1675 = sshll.u32 %s1666, 4
          %s1676 = int_to_ptr.vmem [resolvable:$true] %s1675
          %s1677 = sshll.u32 %s1674, 4
          %s1678 = int_to_ptr.hbm [resolvable:$true] %s1677
          %1683 = dma.vmem_to_hbm [thread:$0]  %s1676, 2048, %s1678, %s1663, 128, 128, 8
        $region32: #{tpu_custom_call.1} parent=27 // pred_fallthru
          _
      $region28: #{tpu_custom_call.1} parent=5 // pred_fallthru
        _
      %p1684 = scmp.le.s32.totalorder 2, %s11
      // Predicated region
      $region33: #{tpu_custom_call.1} parent=5 // pred_check
        %p1685 = pneg %p1684
      $region34: #{tpu_custom_call.1} parent=5 // pred_check_branch
        %1687 = sbr.rel (%p1685) target = $region36
      $region35: #{tpu_custom_call.1} parent=5 // pred_region
        %s1688 = ssub.s32 %s11, 2
        // Predicated region
        $region37: #{tpu_custom_call.1} parent=35 // pred_check
          %p1689 = pneg %p87
        $region38: #{tpu_custom_call.1} parent=35 // pred_check_branch
          %1691 = sbr.rel (%p1689) target = $region40
        $region39: #{tpu_custom_call.1} parent=35 // pred_region
          %s1692 = sand.u32 %s72, 1
          %s1693 = scalar_lea.sflag [#allocation3], %s1692
          %s1694 = sand.u32 %s72, 1
          %s1695 = smul.addr %s1694, 128
          %s1696 = scalar_lea.vmem [#allocation2], %s1695
          %1698 = dma.done %s1693, 2048
        $region40: #{tpu_custom_call.1} parent=35 // pred_fallthru
          _
      $region36: #{tpu_custom_call.1} parent=5 // pred_fallthru
        _
    $region6: #{tpu_custom_call.1} parent=1 // loop_footer
      %s15 = sadd.s32 1, %s11
    $region7: #{tpu_custom_call.1} parent=1 // loop_footer_branch
      %10 = sbr.rel target = $region3
    $region8: #{tpu_custom_call.1} parent=1 // loop_exit
      _
    %1699 = vsyncpa [#allocation3], 1
    %s1700 = scalar_lea.sflag [#allocation3], 1
    %1701 = vsyncpa %s1700, 1

</llo_original>
